<compile_context>
chip_gen: v7x
topology: tpu7x:2x2x1
jax: 0.10.0
libtpu: 0.0.40
codegen_flags: <defaults>
</compile_context>

<pallas_src>
import functools

import jax
import jax.numpy as jnp
from jax.experimental import pallas as pl
from jax.experimental.pallas import tpu as pltpu

MXU_DTYPE = jnp.bfloat16   # matmul operand dtype (accumulation stays f32)


# ---------------------------------------------------------------------------
# In-kernel helpers
# ---------------------------------------------------------------------------
def _time_shift(x32, T):
    """x32: (R, C) f32 rows in node-major / time-minor order (R = tile_nodes*T).

    Returns (x_prev, x_next): rows shifted by +-1 time step within each node,
    zero at t==0 / t==T-1 (matches Conv1d zero padding).  Implemented with an
    XLU rotate + iota mask instead of (NT,NT) shift matmuls.
    """
    R = x32.shape[0]
    t = jax.lax.broadcasted_iota(jnp.int32, (R, 1), 0) % T
    x_prev = jnp.where(t > 0, pltpu.roll(x32, 1, axis=0), 0.0)
    x_next = jnp.where(t < T - 1, pltpu.roll(x32, R - 1, axis=0), 0.0)
    return x_prev, x_next


# ---------------------------------------------------------------------------
# Stage 1: temporal GLU conv #1 (+ graph weight Wg), per node tile
# ---------------------------------------------------------------------------
def _temporal1_kernel(T, H, x_ref, w1_ref, b1_ref, wg_ref, s_ref):
    x32 = x_ref[...].astype(jnp.float32)                      # (R, Cin)
    xp, xn = _time_shift(x32, T)
    cat = jnp.concatenate([xp, x32, xn], axis=1).astype(MXU_DTYPE)   # (R, 3*Cin)
    # taps + both GLU branches fused in a single MXU matmul
    z = jnp.dot(cat, w1_ref[...],
                preferred_element_type=jnp.float32) + b1_ref[...]    # (R, 2H) f32
    h = z[:, :H] * jax.nn.sigmoid(z[:, H:])                          # GLU, f32
    s = jnp.dot(h.astype(MXU_DTYPE), wg_ref[...],
                preferred_element_type=jnp.float32)                  # (R, H)
    s_ref[...] = s.astype(s_ref.dtype)


# ---------------------------------------------------------------------------
# Stage 2: adjacency mix on the (N, T*H) view, per node tile
# ---------------------------------------------------------------------------
def _graph_mix_kernel(adj_ref, s_ref, bg_ref, g_ref):
    g = jnp.dot(adj_ref[...], s_ref[...],
                preferred_element_type=jnp.float32)           # (TILE_N, T*H) f32
    g_ref[...] = (g + bg_ref[...]).astype(g_ref.dtype)        # stored bf16


# ---------------------------------------------------------------------------
# Stage 3: temporal GLU conv #2 + LayerNorm, per node tile
# ---------------------------------------------------------------------------
def _temporal2_kernel(T, O, o_pad, g_ref, w2_ref, b2_ref, gamma_ref, beta_ref,
                      o_ref):
    g32 = g_ref[...].astype(jnp.float32)                      # (R, H)
    gp, gn = _time_shift(g32, T)
    cat = jnp.concatenate([gp, g32, gn], axis=1).astype(MXU_DTYPE)   # (R, 3H)
    z = jnp.dot(cat, w2_ref[...],
                preferred_element_type=jnp.float32) + b2_ref[...]    # (R, 2O)
    y = z[:, :O] * jax.nn.sigmoid(z[:, O:])                          # GLU, f32

    # LayerNorm over the channel (lane) dim, f32 statistics, eps=1e-5
    mu = jnp.mean(y, axis=-1, keepdims=True)
    d = y - mu
    var = jnp.mean(d * d, axis=-1, keepdims=True)
    yn = d * jax.lax.rsqrt(var + 1e-5) * gamma_ref[...] + beta_ref[...]

    # dropout(p=0.1) is identity in eval mode.
    # TODO(synk): training-mode dropout (pltpu.prng_seed / prng_random_bits).

    if o_pad > 0:   # lane-dense store: pad channels to a multiple of 128
        yn = jnp.concatenate(
            [yn, jnp.zeros((yn.shape[0], o_pad), jnp.float32)], axis=1)
    o_ref[...] = yn.astype(o_ref.dtype)


# ---------------------------------------------------------------------------
# One-time parameter packing (fused tap/GLU weights, bf16 casts, tiled biases)
# ---------------------------------------------------------------------------
def pack_params(params, adj, T):
    def fuse_w(wa, wb):     # (3, Ci, Co) x2 -> (3*Ci, 2*Co), tap-major rows
        return jnp.concatenate([wa.reshape(-1, wa.shape[-1]),
                                wb.reshape(-1, wb.shape[-1])],
                               axis=1).astype(MXU_DTYPE)

    def fuse_b(ba, bb):
        return jnp.concatenate([ba, bb]).reshape(1, -1).astype(jnp.float32)

    return dict(
        w1=fuse_w(params["w1a"], params["w1b"]),
        b1=fuse_b(params["b1a"], params["b1b"]),
        wg=params["wg"].astype(MXU_DTYPE),
        bg_row=jnp.tile(params["bg"], T).reshape(1, -1).astype(jnp.float32),
        w2=fuse_w(params["w2a"], params["w2b"]),
        b2=fuse_b(params["b2a"], params["b2b"]),
        gamma=params["gamma"].reshape(1, -1).astype(jnp.float32),
        beta=params["beta"].reshape(1, -1).astype(jnp.float32),
        adj=adj.astype(MXU_DTYPE),          # cast once here, not per grid step
    )


# ---------------------------------------------------------------------------
# Node-tile size: largest multiple-of-8 divisor of N that fits a VMEM budget
# ---------------------------------------------------------------------------
def _pick_tile_n(N, T, cin, H, o_pad, vmem_budget=8 << 20):
    best = None
    for cand in range(8, min(N, 2048) + 1, 8):
        if N % cand:
            continue
        rows = cand * T
        # double-buffered per-step working set across the three stages (rough)
        per_tile = 2 * rows * (cin * 4 + H * 2 + H * 2 + o_pad * 4)
        per_tile += 2 * cand * N * 2            # adj tile (bf16)
        if per_tile <= vmem_budget:
            best = cand
    if best is None:
        best = 8 if N % 8 == 0 else N           # fallback: smallest legal tile
    return best


# ---------------------------------------------------------------------------
# Forward wrapper: three node-tiled pallas_calls + wrapper-side layout plumbing
# ---------------------------------------------------------------------------
@jax.jit
def st_conv_block(x, packed):
    """x: (nodes, time, in_channels) -> (nodes, time, out_channels)."""
    N, T, CIN = x.shape
    H = packed["wg"].shape[0]
    O = packed["b2"].shape[-1] // 2
    NT = N * T
    O_PAD = ((O + 127) // 128) * 128

    TILE_N = _pick_tile_n(N, T, CIN, H, O_PAD)
    TILE_R = TILE_N * T
    n_tiles = N // TILE_N
    assert n_tiles * TILE_N == N
    assert (TILE_R % 8 == 0) or (TILE_R == NT)
    assert (TILE_N % 8 == 0) or (TILE_N == N)

    x2d = x.reshape(NT, CIN).astype(jnp.float32)
    par = pltpu.CompilerParams(dimension_semantics=("parallel",))

    # ---- stage 1: temporal GLU #1 + graph weight ---------------------------
    s = pl.pallas_call(
        functools.partial(_temporal1_kernel, T, H),
        out_shape=jax.ShapeDtypeStruct((NT, H), MXU_DTYPE),
        grid=(n_tiles,),
        in_specs=[
            pl.BlockSpec((TILE_R, CIN), lambda i: (i, 0)),
            pl.BlockSpec((3 * CIN, 2 * H), lambda i: (0, 0)),
            pl.BlockSpec((1, 2 * H), lambda i: (0, 0)),
            pl.BlockSpec((H, H), lambda i: (0, 0)),
        ],
        out_specs=pl.BlockSpec((TILE_R, H), lambda i: (i, 0)),
        compiler_params=par,
    )(x2d, packed["w1"], packed["b1"], packed["wg"])

    # wrapper-side merge (N*T, H) -> (N, T*H): no in-kernel reshape
    s_view = s.reshape(N, T * H)

    # ---- stage 2: adjacency mix (TILE_N, N) @ (N, T*H) ---------------------
    g_view = pl.pallas_call(
        _graph_mix_kernel,
        out_shape=jax.ShapeDtypeStruct((N, T * H), MXU_DTYPE),
        grid=(n_tiles,),
        in_specs=[
            pl.BlockSpec((TILE_N, N), lambda i: (i, 0)),
            pl.BlockSpec((N, T * H), lambda i: (0, 0)),   # resident across steps
            pl.BlockSpec((1, T * H), lambda i: (0, 0)),
        ],
        out_specs=pl.BlockSpec((TILE_N, T * H), lambda i: (i, 0)),
        compiler_params=par,
    )(packed["adj"], s_view, packed["bg_row"])

    # wrapper-side split (N, T*H) -> (N*T, H)
    g_rows = g_view.reshape(NT, H)

    # ---- stage 3: temporal GLU #2 + LayerNorm (lane-dense padded output) ---
    y_pad = pl.pallas_call(
        functools.partial(_temporal2_kernel, T, O, O_PAD - O),
        out_shape=jax.ShapeDtypeStruct((NT, O_PAD), jnp.float32),
        grid=(n_tiles,),
        in_specs=[
            pl.BlockSpec((TILE_R, H), lambda i: (i, 0)),
            pl.BlockSpec((3 * H, 2 * O), lambda i: (0, 0)),
            pl.BlockSpec((1, 2 * O), lambda i: (0, 0)),
            pl.BlockSpec((1, O), lambda i: (0, 0)),
            pl.BlockSpec((1, O), lambda i: (0, 0)),
        ],
        out_specs=pl.BlockSpec((TILE_R, O_PAD), lambda i: (i, 0)),
        compiler_params=par,
    )(g_rows, packed["w2"], packed["b2"], packed["gamma"], packed["beta"])

    return y_pad[:, :O].reshape(N, T, O)


# ---------------------------------------------------------------------------
# Deterministic parameter init (mirrors shapes of the PyTorch module)
# ---------------------------------------------------------------------------
def init_params(key, cin, hidden, cout, ksize=3):
    ks = jax.random.split(key, 5)

    def conv_wb(k, ci, co):
        kw, kb = jax.random.split(k)
        bound = 1.0 / float(ci * ksize) ** 0.5
        # PyTorch Conv1d weight is (co, ci, K); stored here as (K, ci, co).
        w = jax.random.uniform(kw, (ksize, ci, co), jnp.float32, -bound, bound)
        b = jax.random.uniform(kb, (co,), jnp.float32, -bound, bound)
        return w, b

    w1a, b1a = conv_wb(ks[0], cin, hidden)
    w1b, b1b = conv_wb(ks[1], cin, hidden)
    w2a, b2a = conv_wb(ks[2], hidden, cout)
    w2b, b2b = conv_wb(ks[3], hidden, cout)
    xav = (6.0 / (hidden + hidden)) ** 0.5
    wg = jax.random.uniform(ks[4], (hidden, hidden), jnp.float32, -xav, xav)
    bg = jnp.zeros((hidden,), jnp.float32)
    gamma = jnp.ones((cout,), jnp.float32)
    beta = jnp.zeros((cout,), jnp.float32)
    return dict(w1a=w1a, b1a=b1a, w1b=w1b, b1b=b1b, wg=wg, bg=bg,
                w2a=w2a, b2a=b2a, w2b=w2b, b2b=b2b, gamma=gamma, beta=beta)


# ---------------------------------------------------------------------------
# Pure-JAX reference (mirrors the PyTorch forward in eval mode).
# mxu_dtype lets the reference use the same bf16-rounded matmul operands as
# the kernel, so it can be checked with a tight tolerance.
# ---------------------------------------------------------------------------
def ref_forward(x, adj, p, mxu_dtype=jnp.float32):
    def dotf(a, b):
        return jnp.dot(a.astype(mxu_dtype), b.astype(mxu_dtype),
                       preferred_element_type=jnp.float32)

    def tconv(h, w, b):            # h: (N,T,C), w: (3,C,D), b: (D,)
        N, T, C = h.shape
        D = w.shape[-1]
        hp = jnp.pad(h, ((0, 0), (1, 1), (0, 0)))
        out = jnp.zeros((N, T, D), jnp.float32)
        for k in range(3):
            out = out + dotf(hp[:, k:k + T].reshape(N * T, C),
                             w[k]).reshape(N, T, D)
        return out + b

    N, T, _ = x.shape
    h = (tconv(x, p["w1a"], p["b1a"])
         * jax.nn.sigmoid(tconv(x, p["w1b"], p["b1b"])))
    s = dotf(h.reshape(N * T, -1), p["wg"]).reshape(N, -1)     # (N, T*H)
    g = (dotf(adj, s).reshape(N, T, -1) + p["bg"])
    y = (tconv(g, p["w2a"], p["b2a"])
         * jax.nn.sigmoid(tconv(g, p["w2b"], p["b2b"])))
    mu = y.mean(-1, keepdims=True)
    var = ((y - mu) ** 2).mean(-1, keepdims=True)
    return (y - mu) / jnp.sqrt(var + 1e-5) * p["gamma"] + p["beta"]


# ---------------------------------------------------------------------------
if __name__ == "__main__":
    N, T, CIN, H, O = 16, 8, 4, 32, 32   # nodes, time_steps, in, hidden, out

    key = jax.random.PRNGKey(0)
    kx, kadj, kp = jax.random.split(key, 3)
    x = jax.random.normal(kx, (N, T, CIN), jnp.float32)
    adj_raw = jax.random.uniform(kadj, (N, N), jnp.float32)
    adj = adj_raw / jnp.sum(adj_raw, axis=1, keepdims=True)   # row-normalized

    params = init_params(kp, CIN, H, O)
    packed = pack_params(params, adj, T)    # one-time weight packing / casting

    out = jax.block_until_ready(st_conv_block(x, packed))
    assert out.shape == (N, T, O), out.shape

    # Tight check against a reference using the same bf16 MXU operand rounding.
    ref_match = ref_forward(x, adj, params, mxu_dtype=MXU_DTYPE)
    err_match = float(jnp.max(jnp.abs(out - ref_match)))
    assert jnp.allclose(out, ref_match, atol=2e-3, rtol=2e-3), \
        f"max abs err vs matched-precision ref: {err_match}"

    # Loose sanity bound against the pure-f32 reference (bf16 quantization).
    ref_f32 = ref_forward(x, adj, params, mxu_dtype=jnp.float32)
    err_f32 = float(jnp.max(jnp.abs(out - ref_f32)))
    assert err_f32 < 1e-1, f"max abs err vs f32 ref: {err_f32}"

    print("KERNEL_OK")
</pallas_src>

<mosaic_0001>
module attributes {stable_mosaic.version = 11 : i64} {
  func.func @_temporal1_kernel(%arg0: i32, %arg1: memref<128x4xf32, #tpu.memory_space<vmem>>, %arg2: memref<12x64xbf16, #tpu.memory_space<vmem>>, %arg3: memref<1x64xf32, #tpu.memory_space<vmem>>, %arg4: memref<32x32xbf16, #tpu.memory_space<vmem>>, %arg5: memref<128x32xbf16, #tpu.memory_space<vmem>>) attributes {dimension_semantics = [#tpu.dimension_semantics<parallel>], iteration_bounds = array<i64: 1>, scalar_prefetch = 0 : i64, scratch_operands = 0 : i64, tpu.core_type = #tpu.core_type<tc>, window_params = [{transform_indices = @transform_0, window_bounds = array<i64: 128, 4>}, {pipeline_mode = #tpu.pipeline_mode<synchronous>, transform_indices = @transform_1, window_bounds = array<i64: 12, 64>}, {pipeline_mode = #tpu.pipeline_mode<synchronous>, transform_indices = @transform_2, window_bounds = array<i64: 1, 64>}, {pipeline_mode = #tpu.pipeline_mode<synchronous>, transform_indices = @transform_3, window_bounds = array<i64: 32, 32>}, {transform_indices = @transform_4, window_bounds = array<i64: 128, 32>}]} {
    %c0 = arith.constant 0 : index
    %c0_0 = arith.constant 0 : index
    %0 = vector.load %arg1[%c0, %c0_0] : memref<128x4xf32, #tpu.memory_space<vmem>>, vector<128x4xf32>
    %1 = tpu.iota {dimensions = array<i32: 0>} : vector<128x1xi32>
    %c8_i32 = arith.constant 8 : i32
    %c0_i32 = arith.constant 0 : i32
    %2 = arith.cmpi eq, %c8_i32, %c0_i32 : i32
    %c1_i32 = arith.constant 1 : i32
    %3 = arith.select %2, %c1_i32, %c8_i32 : i32
    %4 = vector.broadcast %3 : i32 to vector<128x1xi32>
    %5 = arith.remsi %1, %4 : vector<128x1xi32>
    %c0_i32_1 = arith.constant 0 : i32
    %6 = vector.broadcast %c0_i32_1 : i32 to vector<128x1xi32>
    %7 = arith.cmpi ne, %5, %6 : vector<128x1xi32>
    %c0_i32_2 = arith.constant 0 : i32
    %8 = vector.broadcast %c0_i32_2 : i32 to vector<128x1xi32>
    %9 = arith.cmpi slt, %5, %8 : vector<128x1xi32>
    %c0_i32_3 = arith.constant 0 : i32
    %10 = arith.cmpi slt, %3, %c0_i32_3 : i32
    %11 = vector.broadcast %10 : i1 to vector<128x1xi1>
    %12 = vector.broadcast %11 : vector<128x1xi1> to vector<128x1xi1>
    %13 = arith.xori %9, %12 : vector<128x1xi1>
    %14 = arith.andi %13, %7 : vector<128x1xi1>
    %15 = vector.broadcast %3 : i32 to vector<128x1xi32>
    %16 = arith.addi %5, %15 : vector<128x1xi32>
    %17 = arith.select %14, %16, %5 : vector<128x1xi1>, vector<128x1xi32>
    %c0_i32_4 = arith.constant 0 : i32
    %18 = vector.broadcast %c0_i32_4 : i32 to vector<128x1xi32>
    %19 = arith.cmpi sgt, %17, %18 : vector<128x1xi32>
    %c1_i32_5 = arith.constant 1 : i32
    %20 = tpu.dynamic_rotate %0 by %c1_i32_5 dim 0 : vector<128x4xf32>, i32 -> vector<128x4xf32>
    %cst = arith.constant 0.000000e+00 : f32
    %21 = vector.shape_cast %19 : vector<128x1xi1> to vector<128x1xi1>
    %22 = vector.broadcast %21 : vector<128x1xi1> to vector<128x4xi1>
    %23 = vector.broadcast %cst : f32 to vector<128x4xf32>
    %24 = arith.select %22, %20, %23 : vector<128x4xi1>, vector<128x4xf32>
    %c7_i32 = arith.constant 7 : i32
    %25 = vector.broadcast %c7_i32 : i32 to vector<128x1xi32>
    %26 = arith.cmpi slt, %17, %25 : vector<128x1xi32>
    %c127_i32 = arith.constant 127 : i32
    %27 = tpu.dynamic_rotate %0 by %c127_i32 dim 0 : vector<128x4xf32>, i32 -> vector<128x4xf32>
    %cst_6 = arith.constant 0.000000e+00 : f32
    %28 = vector.shape_cast %26 : vector<128x1xi1> to vector<128x1xi1>
    %29 = vector.broadcast %28 : vector<128x1xi1> to vector<128x4xi1>
    %30 = vector.broadcast %cst_6 : f32 to vector<128x4xf32>
    %31 = arith.select %29, %27, %30 : vector<128x4xi1>, vector<128x4xf32>
    %32 = tpu.concatenate %24, %0, %31 in 1 : vector<128x4xf32>, vector<128x4xf32>, vector<128x4xf32> -> vector<128x12xf32>
    %33 = arith.truncf %32 : vector<128x12xf32> to vector<128x12xbf16>
    %c0_7 = arith.constant 0 : index
    %c0_8 = arith.constant 0 : index
    %34 = vector.load %arg2[%c0_7, %c0_8] : memref<12x64xbf16, #tpu.memory_space<vmem>>, vector<12x64xbf16>
    %cst_9 = arith.constant dense<0.000000e+00> : vector<128x64xf32>
    %35 = tpu.matmul %33, %34, %cst_9 {dimension_numbers = #tpu.dot_dimension_numbers<[1], [0], [0], [1], [0, 0, 1, 1], [], []>} : vector<128x12xbf16>, vector<12x64xbf16>, vector<128x64xf32> -> vector<128x64xf32>
    %c0_10 = arith.constant 0 : index
    %c0_11 = arith.constant 0 : index
    %36 = vector.load %arg3[%c0_10, %c0_11] : memref<1x64xf32, #tpu.memory_space<vmem>>, vector<1x64xf32>
    %37 = vector.broadcast %36 : vector<1x64xf32> to vector<128x64xf32>
    %38 = arith.addf %35, %37 : vector<128x64xf32>
    %39 = vector.extract_strided_slice %38 {offsets = [0, 0], sizes = [128, 32], strides = [1, 1]} : vector<128x64xf32> to vector<128x32xf32>
    %40 = vector.extract_strided_slice %38 {offsets = [0, 32], sizes = [128, 32], strides = [1, 1]} : vector<128x64xf32> to vector<128x32xf32>
    %41 = arith.negf %40 : vector<128x32xf32>
    %42 = math.exp %41 : vector<128x32xf32>
    %cst_12 = arith.constant 1.000000e+00 : f32
    %43 = vector.broadcast %cst_12 : f32 to vector<128x32xf32>
    %44 = arith.addf %43, %42 : vector<128x32xf32>
    %45 = arith.divf %43, %44 : vector<128x32xf32>
    %46 = arith.mulf %39, %45 : vector<128x32xf32>
    %47 = arith.truncf %46 : vector<128x32xf32> to vector<128x32xbf16>
    %c0_13 = arith.constant 0 : index
    %c0_14 = arith.constant 0 : index
    %48 = vector.load %arg4[%c0_13, %c0_14] : memref<32x32xbf16, #tpu.memory_space<vmem>>, vector<32x32xbf16>
    %cst_15 = arith.constant dense<0.000000e+00> : vector<128x32xf32>
    %49 = tpu.matmul %47, %48, %cst_15 {dimension_numbers = #tpu.dot_dimension_numbers<[1], [0], [0], [1], [0, 0, 1, 1], [], []>} : vector<128x32xbf16>, vector<32x32xbf16>, vector<128x32xf32> -> vector<128x32xf32>
    %50 = arith.truncf %49 : vector<128x32xf32> to vector<128x32xbf16>
    %c0_16 = arith.constant 0 : index
    %c0_17 = arith.constant 0 : index
    %51 = vector.load %arg5[%c0_16, %c0_17] : memref<128x32xbf16, #tpu.memory_space<vmem>>, vector<128x32xbf16>
    tpu.vector_store %arg5[%c0_16, %c0_17], %50 {strides = array<i32>} : memref<128x32xbf16, #tpu.memory_space<vmem>>, vector<128x32xbf16>,
    return
  }
  func.func @transform_0(%arg0: i32) -> (i32, i32) {
    %c0_i32 = arith.constant 0 : i32
    %c0_i32_0 = arith.constant 0 : i32
    return %arg0, %c0_i32 : i32, i32
  }
  func.func @transform_1(%arg0: i32) -> (i32, i32) {
    %c0_i32 = arith.constant 0 : i32
    %c0_i32_0 = arith.constant 0 : i32
    %c0_i32_1 = arith.constant 0 : i32
    return %c0_i32, %c0_i32_0 : i32, i32
  }
  func.func @transform_2(%arg0: i32) -> (i32, i32) {
    %c0_i32 = arith.constant 0 : i32
    %c0_i32_0 = arith.constant 0 : i32
    %c0_i32_1 = arith.constant 0 : i32
    return %c0_i32, %c0_i32_0 : i32, i32
  }
  func.func @transform_3(%arg0: i32) -> (i32, i32) {
    %c0_i32 = arith.constant 0 : i32
    %c0_i32_0 = arith.constant 0 : i32
    %c0_i32_1 = arith.constant 0 : i32
    return %c0_i32, %c0_i32_0 : i32, i32
  }
  func.func @transform_4(%arg0: i32) -> (i32, i32) {
    %c0_i32 = arith.constant 0 : i32
    %c0_i32_0 = arith.constant 0 : i32
    return %arg0, %c0_i32 : i32, i32
  }
}

module attributes {stable_mosaic.version = 11 : i64} {
  func.func @_temporal2_kernel(%arg0: i32, %arg1: memref<128x32xbf16, #tpu.memory_space<vmem>>, %arg2: memref<96x64xbf16, #tpu.memory_space<vmem>>, %arg3: memref<1x64xf32, #tpu.memory_space<vmem>>, %arg4: memref<1x32xf32, #tpu.memory_space<vmem>>, %arg5: memref<1x32xf32, #tpu.memory_space<vmem>>, %arg6: memref<128x128xf32, #tpu.memory_space<vmem>>) attributes {dimension_semantics = [#tpu.dimension_semantics<parallel>], iteration_bounds = array<i64: 1>, scalar_prefetch = 0 : i64, scratch_operands = 0 : i64, tpu.core_type = #tpu.core_type<tc>, window_params = [{transform_indices = @transform_0, window_bounds = array<i64: 128, 32>}, {pipeline_mode = #tpu.pipeline_mode<synchronous>, transform_indices = @transform_1, window_bounds = array<i64: 96, 64>}, {pipeline_mode = #tpu.pipeline_mode<synchronous>, transform_indices = @transform_2, window_bounds = array<i64: 1, 64>}, {pipeline_mode = #tpu.pipeline_mode<synchronous>, transform_indices = @transform_3, window_bounds = array<i64: 1, 32>}, {pipeline_mode = #tpu.pipeline_mode<synchronous>, transform_indices = @transform_4, window_bounds = array<i64: 1, 32>}, {transform_indices = @transform_5, window_bounds = array<i64: 128, 128>}]} {
    %c0 = arith.constant 0 : index
    %c0_0 = arith.constant 0 : index
    %0 = vector.load %arg1[%c0, %c0_0] : memref<128x32xbf16, #tpu.memory_space<vmem>>, vector<128x32xbf16>
    %1 = arith.extf %0 : vector<128x32xbf16> to vector<128x32xf32>
    %2 = tpu.iota {dimensions = array<i32: 0>} : vector<128x1xi32>
    %c8_i32 = arith.constant 8 : i32
    %c0_i32 = arith.constant 0 : i32
    %3 = arith.cmpi eq, %c8_i32, %c0_i32 : i32
    %c1_i32 = arith.constant 1 : i32
    %4 = arith.select %3, %c1_i32, %c8_i32 : i32
    %5 = vector.broadcast %4 : i32 to vector<128x1xi32>
    %6 = arith.remsi %2, %5 : vector<128x1xi32>
    %c0_i32_1 = arith.constant 0 : i32
    %7 = vector.broadcast %c0_i32_1 : i32 to vector<128x1xi32>
    %8 = arith.cmpi ne, %6, %7 : vector<128x1xi32>
    %c0_i32_2 = arith.constant 0 : i32
    %9 = vector.broadcast %c0_i32_2 : i32 to vector<128x1xi32>
    %10 = arith.cmpi slt, %6, %9 : vector<128x1xi32>
    %c0_i32_3 = arith.constant 0 : i32
    %11 = arith.cmpi slt, %4, %c0_i32_3 : i32
    %12 = vector.broadcast %11 : i1 to vector<128x1xi1>
    %13 = vector.broadcast %12 : vector<128x1xi1> to vector<128x1xi1>
    %14 = arith.xori %10, %13 : vector<128x1xi1>
    %15 = arith.andi %14, %8 : vector<128x1xi1>
    %16 = vector.broadcast %4 : i32 to vector<128x1xi32>
    %17 = arith.addi %6, %16 : vector<128x1xi32>
    %18 = arith.select %15, %17, %6 : vector<128x1xi1>, vector<128x1xi32>
    %c0_i32_4 = arith.constant 0 : i32
    %19 = vector.broadcast %c0_i32_4 : i32 to vector<128x1xi32>
    %20 = arith.cmpi sgt, %18, %19 : vector<128x1xi32>
    %c1_i32_5 = arith.constant 1 : i32
    %21 = tpu.dynamic_rotate %1 by %c1_i32_5 dim 0 : vector<128x32xf32>, i32 -> vector<128x32xf32>
    %cst = arith.constant 0.000000e+00 : f32
    %22 = vector.shape_cast %20 : vector<128x1xi1> to vector<128x1xi1>
    %23 = vector.broadcast %22 : vector<128x1xi1> to vector<128x32xi1>
    %24 = vector.broadcast %cst : f32 to vector<128x32xf32>
    %25 = arith.select %23, %21, %24 : vector<128x32xi1>, vector<128x32xf32>
    %c7_i32 = arith.constant 7 : i32
    %26 = vector.broadcast %c7_i32 : i32 to vector<128x1xi32>
    %27 = arith.cmpi slt, %18, %26 : vector<128x1xi32>
    %c127_i32 = arith.constant 127 : i32
    %28 = tpu.dynamic_rotate %1 by %c127_i32 dim 0 : vector<128x32xf32>, i32 -> vector<128x32xf32>
    %cst_6 = arith.constant 0.000000e+00 : f32
    %29 = vector.shape_cast %27 : vector<128x1xi1> to vector<128x1xi1>
    %30 = vector.broadcast %29 : vector<128x1xi1> to vector<128x32xi1>
    %31 = vector.broadcast %cst_6 : f32 to vector<128x32xf32>
    %32 = arith.select %30, %28, %31 : vector<128x32xi1>, vector<128x32xf32>
    %33 = tpu.concatenate %25, %1, %32 in 1 : vector<128x32xf32>, vector<128x32xf32>, vector<128x32xf32> -> vector<128x96xf32>
    %34 = arith.truncf %33 : vector<128x96xf32> to vector<128x96xbf16>
    %c0_7 = arith.constant 0 : index
    %c0_8 = arith.constant 0 : index
    %35 = vector.load %arg2[%c0_7, %c0_8] : memref<96x64xbf16, #tpu.memory_space<vmem>>, vector<96x64xbf16>
    %cst_9 = arith.constant dense<0.000000e+00> : vector<128x64xf32>
    %36 = tpu.matmul %34, %35, %cst_9 {dimension_numbers = #tpu.dot_dimension_numbers<[1], [0], [0], [1], [0, 0, 1, 1], [], []>} : vector<128x96xbf16>, vector<96x64xbf16>, vector<128x64xf32> -> vector<128x64xf32>
    %c0_10 = arith.constant 0 : index
    %c0_11 = arith.constant 0 : index
    %37 = vector.load %arg3[%c0_10, %c0_11] : memref<1x64xf32, #tpu.memory_space<vmem>>, vector<1x64xf32>
    %38 = vector.broadcast %37 : vector<1x64xf32> to vector<128x64xf32>
    %39 = arith.addf %36, %38 : vector<128x64xf32>
    %40 = vector.extract_strided_slice %39 {offsets = [0, 0], sizes = [128, 32], strides = [1, 1]} : vector<128x64xf32> to vector<128x32xf32>
    %41 = vector.extract_strided_slice %39 {offsets = [0, 32], sizes = [128, 32], strides = [1, 1]} : vector<128x64xf32> to vector<128x32xf32>
    %42 = arith.negf %41 : vector<128x32xf32>
    %43 = math.exp %42 : vector<128x32xf32>
    %cst_12 = arith.constant 1.000000e+00 : f32
    %44 = vector.broadcast %cst_12 : f32 to vector<128x32xf32>
    %45 = arith.addf %44, %43 : vector<128x32xf32>
    %46 = arith.divf %44, %45 : vector<128x32xf32>
    %47 = arith.mulf %40, %46 : vector<128x32xf32>
    %cst_13 = arith.constant dense<0.000000e+00> : vector<128xf32>
    %48 = vector.multi_reduction <add>, %47, %cst_13 [1] : vector<128x32xf32> to vector<128xf32>
    %49 = vector.shape_cast %48 : vector<128xf32> to vector<128x1xf32>
    %cst_14 = arith.constant 3.200000e+01 : f32
    %50 = vector.broadcast %cst_14 : f32 to vector<128x1xf32>
    %51 = arith.divf %49, %50 : vector<128x1xf32>
    %52 = vector.broadcast %51 : vector<128x1xf32> to vector<128x32xf32>
    %53 = arith.subf %47, %52 : vector<128x32xf32>
    %54 = arith.mulf %53, %53 : vector<128x32xf32>
    %cst_15 = arith.constant dense<0.000000e+00> : vector<128xf32>
    %55 = vector.multi_reduction <add>, %54, %cst_15 [1] : vector<128x32xf32> to vector<128xf32>
    %56 = vector.shape_cast %55 : vector<128xf32> to vector<128x1xf32>
    %cst_16 = arith.constant 3.200000e+01 : f32
    %57 = vector.broadcast %cst_16 : f32 to vector<128x1xf32>
    %58 = arith.divf %56, %57 : vector<128x1xf32>
    %cst_17 = arith.constant 9.99999974E-6 : f32
    %59 = vector.broadcast %cst_17 : f32 to vector<128x1xf32>
    %60 = arith.addf %58, %59 : vector<128x1xf32>
    %61 = math.rsqrt %60 : vector<128x1xf32>
    %62 = vector.broadcast %61 : vector<128x1xf32> to vector<128x32xf32>
    %63 = arith.mulf %53, %62 : vector<128x32xf32>
    %c0_18 = arith.constant 0 : index
    %c0_19 = arith.constant 0 : index
    %64 = vector.load %arg4[%c0_18, %c0_19] : memref<1x32xf32, #tpu.memory_space<vmem>>, vector<1x32xf32>
    %65 = vector.broadcast %64 : vector<1x32xf32> to vector<128x32xf32>
    %66 = arith.mulf %63, %65 : vector<128x32xf32>
    %c0_20 = arith.constant 0 : index
    %c0_21 = arith.constant 0 : index
    %67 = vector.load %arg5[%c0_20, %c0_21] : memref<1x32xf32, #tpu.memory_space<vmem>>, vector<1x32xf32>
    %68 = vector.broadcast %67 : vector<1x32xf32> to vector<128x32xf32>
    %69 = arith.addf %66, %68 : vector<128x32xf32>
    %cst_22 = arith.constant 0.000000e+00 : f32
    %70 = vector.broadcast %cst_22 : f32 to vector<128x96xf32>
    %71 = tpu.concatenate %69, %70 in 1 : vector<128x32xf32>, vector<128x96xf32> -> vector<128x128xf32>
    %c0_23 = arith.constant 0 : index
    %c0_24 = arith.constant 0 : index
    %72 = vector.load %arg6[%c0_23, %c0_24] : memref<128x128xf32, #tpu.memory_space<vmem>>, vector<128x128xf32>
    tpu.vector_store %arg6[%c0_23, %c0_24], %71 {strides = array<i32>} : memref<128x128xf32, #tpu.memory_space<vmem>>, vector<128x128xf32>,
    return
  }
  func.func @transform_0(%arg0: i32) -> (i32, i32) {
    %c0_i32 = arith.constant 0 : i32
    %c0_i32_0 = arith.constant 0 : i32
    return %arg0, %c0_i32 : i32, i32
  }
  func.func @transform_1(%arg0: i32) -> (i32, i32) {
    %c0_i32 = arith.constant 0 : i32
    %c0_i32_0 = arith.constant 0 : i32
    %c0_i32_1 = arith.constant 0 : i32
    return %c0_i32, %c0_i32_0 : i32, i32
  }
  func.func @transform_2(%arg0: i32) -> (i32, i32) {
    %c0_i32 = arith.constant 0 : i32
    %c0_i32_0 = arith.constant 0 : i32
    %c0_i32_1 = arith.constant 0 : i32
    return %c0_i32, %c0_i32_0 : i32, i32
  }
  func.func @transform_3(%arg0: i32) -> (i32, i32) {
    %c0_i32 = arith.constant 0 : i32
    %c0_i32_0 = arith.constant 0 : i32
    %c0_i32_1 = arith.constant 0 : i32
    return %c0_i32, %c0_i32_0 : i32, i32
  }
  func.func @transform_4(%arg0: i32) -> (i32, i32) {
    %c0_i32 = arith.constant 0 : i32
    %c0_i32_0 = arith.constant 0 : i32
    %c0_i32_1 = arith.constant 0 : i32
    return %c0_i32, %c0_i32_0 : i32, i32
  }
  func.func @transform_5(%arg0: i32) -> (i32, i32) {
    %c0_i32 = arith.constant 0 : i32
    %c0_i32_0 = arith.constant 0 : i32
    return %arg0, %c0_i32 : i32, i32
  }
}

module attributes {stable_mosaic.version = 11 : i64} {
  func.func @_graph_mix_kernel(%arg0: i32, %arg1: memref<16x16xbf16, #tpu.memory_space<vmem>>, %arg2: memref<16x256xbf16, #tpu.memory_space<vmem>>, %arg3: memref<1x256xf32, #tpu.memory_space<vmem>>, %arg4: memref<16x256xbf16, #tpu.memory_space<vmem>>) attributes {dimension_semantics = [#tpu.dimension_semantics<parallel>], iteration_bounds = array<i64: 1>, scalar_prefetch = 0 : i64, scratch_operands = 0 : i64, tpu.core_type = #tpu.core_type<tc>, window_params = [{transform_indices = @transform_0, window_bounds = array<i64: 16, 16>}, {pipeline_mode = #tpu.pipeline_mode<synchronous>, transform_indices = @transform_1, window_bounds = array<i64: 16, 256>}, {pipeline_mode = #tpu.pipeline_mode<synchronous>, transform_indices = @transform_2, window_bounds = array<i64: 1, 256>}, {transform_indices = @transform_3, window_bounds = array<i64: 16, 256>}]} {
    %c0 = arith.constant 0 : index
    %c0_0 = arith.constant 0 : index
    %0 = vector.load %arg1[%c0, %c0_0] : memref<16x16xbf16, #tpu.memory_space<vmem>>, vector<16x16xbf16>
    %c0_1 = arith.constant 0 : index
    %c0_2 = arith.constant 0 : index
    %1 = vector.load %arg2[%c0_1, %c0_2] : memref<16x256xbf16, #tpu.memory_space<vmem>>, vector<16x256xbf16>
    %cst = arith.constant dense<0.000000e+00> : vector<16x256xf32>
    %2 = tpu.matmul %0, %1, %cst {dimension_numbers = #tpu.dot_dimension_numbers<[1], [0], [0], [1], [0, 0, 1, 1], [], []>} : vector<16x16xbf16>, vector<16x256xbf16>, vector<16x256xf32> -> vector<16x256xf32>
    %c0_3 = arith.constant 0 : index
    %c0_4 = arith.constant 0 : index
    %3 = vector.load %arg3[%c0_3, %c0_4] : memref<1x256xf32, #tpu.memory_space<vmem>>, vector<1x256xf32>
    %4 = vector.broadcast %3 : vector<1x256xf32> to vector<16x256xf32>
    %5 = arith.addf %2, %4 : vector<16x256xf32>
    %6 = arith.truncf %5 : vector<16x256xf32> to vector<16x256xbf16>
    %c0_5 = arith.constant 0 : index
    %c0_6 = arith.constant 0 : index
    %7 = vector.load %arg4[%c0_5, %c0_6] : memref<16x256xbf16, #tpu.memory_space<vmem>>, vector<16x256xbf16>
    tpu.vector_store %arg4[%c0_5, %c0_6], %6 {strides = array<i32>} : memref<16x256xbf16, #tpu.memory_space<vmem>>, vector<16x256xbf16>,
    return
  }
  func.func @transform_0(%arg0: i32) -> (i32, i32) {
    %c0_i32 = arith.constant 0 : i32
    %c0_i32_0 = arith.constant 0 : i32
    return %arg0, %c0_i32 : i32, i32
  }
  func.func @transform_1(%arg0: i32) -> (i32, i32) {
    %c0_i32 = arith.constant 0 : i32
    %c0_i32_0 = arith.constant 0 : i32
    %c0_i32_1 = arith.constant 0 : i32
    return %c0_i32, %c0_i32_0 : i32, i32
  }
  func.func @transform_2(%arg0: i32) -> (i32, i32) {
    %c0_i32 = arith.constant 0 : i32
    %c0_i32_0 = arith.constant 0 : i32
    %c0_i32_1 = arith.constant 0 : i32
    return %c0_i32, %c0_i32_0 : i32, i32
  }
  func.func @transform_3(%arg0: i32) -> (i32, i32) {
    %c0_i32 = arith.constant 0 : i32
    %c0_i32_0 = arith.constant 0 : i32
    return %arg0, %c0_i32 : i32, i32
  }
}

</mosaic_0001>

<llo_original>
// kernel: st_conv_block.4
$region0: #{st_conv_block.4}
  #allocation0 [shape = 'u32[]', space=smem, size = 0x4, offset = 0x4, fixed_abs, tag = 'smem constant byte address 0x4 - core index']
  #allocation1 [shape = 'u32[144,128]{1,0:T(1,128)}', space=vmem, size = 0x12000, scoped, tag = 'internal scratch']
  %s0 = inlined_call_operand.vmem [shape: bf16[16,16], index: 0, kind: input, shape index: {}]
  %s1 = inlined_call_operand.vmem [shape: bf16[16,256], index: 1, kind: input, shape index: {}]
  %s2 = inlined_call_operand.vmem [shape: f32[1,256], index: 2, kind: input, shape index: {}]
  %s3 = inlined_call_operand.vmem [shape: bf16[16,256], index: 3, kind: output, shape index: {}]
  %s4 = sld [smem:[#allocation0]]
  $region22: #{st_conv_block.4} parent=0
    _
  %s6 = ssub.s32 1, %s4
  %s7 = scalar_select 0, %s6, %s4
  // Predicated region
  $region2: #{st_conv_block.4} parent=0 // pred_check
    _
  $region3: #{st_conv_block.4} parent=0 // pred_check_branch
    %9 = sbr.rel (0) target = $region5
  $region4: #{st_conv_block.4} parent=0 // pred_region
    _
  $region5: #{st_conv_block.4} parent=0 // pred_fallthru
    _
  // Predicated region
  $region6: #{st_conv_block.4} parent=0 // pred_check
    _
  $region7: #{st_conv_block.4} parent=0 // pred_check_branch
    %11 = sbr.rel (0) target = $region9
  $region8: #{st_conv_block.4} parent=0 // pred_region
    _
  $region9: #{st_conv_block.4} parent=0 // pred_fallthru
    _
  // Predicated region
  $region10: #{st_conv_block.4} parent=0 // pred_check
    _
  $region11: #{st_conv_block.4} parent=0 // pred_check_branch
    %13 = sbr.rel (0) target = $region13
  $region12: #{st_conv_block.4} parent=0 // pred_region
    _
  $region13: #{st_conv_block.4} parent=0 // pred_fallthru
    _
  %v15 = vld [vmem:[%s0] sm:$0xf]
  %v16 = vld [vmem:[%s0 + $0x4] sm:$0xf]
  %v17 = vld [vmem:[%s1] sm:$0xff]
  %v18 = vld [vmem:[%s1 + $0x8] sm:$0xff]
  %v19 = vld [vmem:[%s2] sm:$0x3]
  %v21 = vlaneseq
  %v22 = vshrl.u32 %v21, 7
  %v23 = vsub.s32 0, %v22
  %v24 = vrot.slane %v19, %v23
  %v25 = vlaneseq
  %v26 = vshrl.u32 %v25, 7
  %v27 = vsub.s32 1, %v26
  %v28 = vrot.slane %v19, %v27
  %v33 = vunpack.c.l.b16 %v15
  %v34 = vunpack.c.l.b16 %v16
  %v35 = vpack.c.b16 %v34, %v33
  %v38 = vunpack.c.l.b16 %v17
  %v39 = vunpack.c.h.b16 %v17
  %v40 = vunpack.c.l.b16 %v18
  %v41 = vunpack.c.h.b16 %v18
  %v42 = vpack.c.b16 %v40, %v38
  %v43 = vpack.c.b16 %v41, %v39
  %vm46 = vcmask 130048
  %v48 = vsel %vm46, %v35, 0
  %50 = vmatprep.subr.bf16.mxu0 %v43
  %51 = vmatpush1.bf16.msra.mxu0 %v42
  %52 = vmatprep.subr.bf16.mxu0 0
  %53 = vmatpush1.bf16.msra.mxu0 0
  %54 = vmatprep.subr.bf16.mxu0 0
  %55 = vmatpush1.bf16.msra.mxu0 0
  %56 = vmatprep.subr.bf16.mxu0 0
  %57 = vmatpush1.bf16.msra.mxu0 0
  %58 = vmatprep.subr.bf16.mxu0 0
  %59 = vmatpush1.bf16.msra.mxu0 0
  %60 = vmatprep.subr.bf16.mxu0 0
  %61 = vmatpush1.bf16.msra.mxu0 0
  %62 = vmatprep.subr.bf16.mxu0 0
  %63 = vmatpush1.bf16.msra.mxu0 0
  %64 = vmatprep.subr.bf16.mxu0 0
  %65 = vmatpush1.bf16.msra.mxu0 0
  %66 = vmatprep.subr.bf16.mxu0 0
  %67 = vmatpush1.bf16.msra.mxu0 0
  %68 = vmatprep.subr.bf16.mxu0 0
  %69 = vmatpush1.bf16.msra.mxu0 0
  %70 = vmatprep.subr.bf16.mxu0 0
  %71 = vmatpush1.bf16.msra.mxu0 0
  %72 = vmatprep.subr.bf16.mxu0 0
  %73 = vmatpush1.bf16.msra.mxu0 0
  %74 = vmatprep.subr.bf16.mxu0 0
  %75 = vmatpush1.bf16.msra.mxu0 0
  %76 = vmatprep.subr.bf16.mxu0 0
  %77 = vmatpush1.bf16.msra.mxu0 0
  %78 = vmatprep.subr.bf16.mxu0 0
  %79 = vmatpush1.bf16.msra.mxu0 0
  %80 = vmatprep.subr.bf16.mxu0 0
  %81 = vmatpush1.bf16.msra.mxu0 0
  %82 = vmatprep.mubr.bf16.mxu0 0
  %83 = vmatmul.mubr.bf16.gmra.mrb[0].mxu0 %v48
  %v84 = vpop.f32.mrb[0].mxu0
  %v85 = vadd.f32 %v24, %v84
  %v86 = vpop.f32.mrb[0].mxu0
  %v87 = vadd.f32 %v28, %v86
  %v88 = vpop.f32.mrb[0].mxu0
  %v89 = vadd.f32 %v24, %v88
  %v90 = vpop.f32.mrb[0].mxu0
  %v91 = vadd.f32 %v28, %v90
  %92 = vdwg.mxu0
  %v93 = vpack.c.bf16 %v89, %v85
  %v94 = vpack.c.bf16 %v91, %v87
  %v97 = vunpack.c.l.b16 %v93
  %v98 = vunpack.c.l.b16 %v94
  %v99 = vunpack.c.h.b16 %v93
  %v100 = vunpack.c.h.b16 %v94
  %v101 = vpack.c.b16 %v98, %v97
  %v102 = vpack.c.b16 %v100, %v99
  %105 = vst [vmem:[%s3] sm:$0xff] %v101
  %106 = vst [vmem:[%s3 + $0x8] sm:$0xff] %v102
  // Predicated region
  $region14: #{st_conv_block.4} parent=0 // pred_check
    _
  $region15: #{st_conv_block.4} parent=0 // pred_check_branch
    %108 = sbr.rel (0) target = $region17
  $region16: #{st_conv_block.4} parent=0 // pred_region
    _
  $region17: #{st_conv_block.4} parent=0 // pred_fallthru
    _
  // Predicated region
  $region18: #{st_conv_block.4} parent=0 // pred_check
    _
  $region19: #{st_conv_block.4} parent=0 // pred_check_branch
    %110 = sbr.rel (0) target = $region21
  $region20: #{st_conv_block.4} parent=0 // pred_region
    _
  $region21: #{st_conv_block.4} parent=0 // pred_fallthru
    _

// kernel: st_conv_block.3
$region0: #{st_conv_block.3}
  #allocation0 [shape = 'u32[]', space=smem, size = 0x4, offset = 0x4, fixed_abs, tag = 'smem constant byte address 0x4 - core index']
  #allocation1 [shape = 'u32[144,128]{1,0:T(1,128)}', space=vmem, size = 0x12000, scoped, tag = 'internal scratch']
  %s0 = inlined_call_operand.vmem [shape: f32[128,4], index: 0, kind: input, shape index: {}]
  %s1 = inlined_call_operand.vmem [shape: bf16[12,64], index: 1, kind: input, shape index: {}]
  %s2 = inlined_call_operand.vmem [shape: f32[1,64], index: 2, kind: input, shape index: {}]
  %s3 = inlined_call_operand.vmem [shape: bf16[32,32], index: 3, kind: input, shape index: {}]
  %s4 = inlined_call_operand.vmem [shape: bf16[128,32], index: 4, kind: output, shape index: {}]
  %s5 = sld [smem:[#allocation0]]
  $region26: #{st_conv_block.3} parent=0
    _
  %s7 = ssub.s32 1, %s5
  %s8 = scalar_select 0, %s7, %s5
  // Predicated region
  $region2: #{st_conv_block.3} parent=0 // pred_check
    _
  $region3: #{st_conv_block.3} parent=0 // pred_check_branch
    %10 = sbr.rel (0) target = $region5
  $region4: #{st_conv_block.3} parent=0 // pred_region
    _
  $region5: #{st_conv_block.3} parent=0 // pred_fallthru
    _
  // Predicated region
  $region6: #{st_conv_block.3} parent=0 // pred_check
    _
  $region7: #{st_conv_block.3} parent=0 // pred_check_branch
    %12 = sbr.rel (0) target = $region9
  $region8: #{st_conv_block.3} parent=0 // pred_region
    _
  $region9: #{st_conv_block.3} parent=0 // pred_fallthru
    _
  // Predicated region
  $region10: #{st_conv_block.3} parent=0 // pred_check
    _
  $region11: #{st_conv_block.3} parent=0 // pred_check_branch
    %14 = sbr.rel (0) target = $region13
  $region12: #{st_conv_block.3} parent=0 // pred_region
    _
  $region13: #{st_conv_block.3} parent=0 // pred_fallthru
    _
  // Predicated region
  $region14: #{st_conv_block.3} parent=0 // pred_check
    _
  $region15: #{st_conv_block.3} parent=0 // pred_check_branch
    %16 = sbr.rel (0) target = $region17
  $region16: #{st_conv_block.3} parent=0 // pred_region
    _
  $region17: #{st_conv_block.3} parent=0 // pred_fallthru
    _
  %v18 = vld [vmem:[%s0] sm:$0xff]
  %v19 = vld [vmem:[%s0 + $0x8] sm:$0xff]
  %v20 = vld [vmem:[%s0 + $0x10] sm:$0xff]
  %v21 = vld [vmem:[%s0 + $0x18] sm:$0xff]
  %v22 = vld [vmem:[%s0 + $0x20] sm:$0xff]
  %v23 = vld [vmem:[%s0 + $0x28] sm:$0xff]
  %v24 = vld [vmem:[%s0 + $0x30] sm:$0xff]
  %v25 = vld [vmem:[%s0 + $0x38] sm:$0xff]
  %v26 = vld [vmem:[%s0 + $0x40] sm:$0xff]
  %v27 = vld [vmem:[%s0 + $0x48] sm:$0xff]
  %v28 = vld [vmem:[%s0 + $0x50] sm:$0xff]
  %v29 = vld [vmem:[%s0 + $0x58] sm:$0xff]
  %v30 = vld [vmem:[%s0 + $0x60] sm:$0xff]
  %v31 = vld [vmem:[%s0 + $0x68] sm:$0xff]
  %v32 = vld [vmem:[%s0 + $0x70] sm:$0xff]
  %v33 = vld [vmem:[%s0 + $0x78] sm:$0xff]
  %v34 = vlaneseq
  %v35 = vshrl.u32 %v34, 7
  %v36 = vadd.s32 %v35, 8
  %v37 = vadd.s32 %v35, 16
  %v38 = vadd.s32 %v35, 24
  %v39 = vadd.s32 %v35, 32
  %v40 = vadd.s32 %v35, 40
  %v41 = vadd.s32 %v35, 48
  %v42 = vadd.s32 %v35, 56
  %v43 = vadd.s32 %v35, 64
  %v44 = vadd.s32 %v35, 72
  %v45 = vadd.s32 %v35, 80
  %v46 = vadd.s32 %v35, 88
  %v47 = vadd.s32 %v35, 96
  %v48 = vadd.s32 %v35, 104
  %v49 = vadd.s32 %v35, 112
  %v50 = vadd.s32 %v35, 120
  %vm51 = vcmp.lt.s32.totalorder %v35, 0
  %v52 = vsub.s32 0, %v35
  %v53 = vsel %vm51, %v52, %v35
  %v54 = vshrl.u32 %v53, 3
  %v55 = vand.u32 %v53, 7
  %v56 = vsub.s32 0, %v55
  %v57 = vsel %vm51, %v56, %v55
  %vm58 = vcmp.lt.s32.totalorder %v36, 0
  %v59 = vsub.s32 0, %v36
  %v60 = vsel %vm58, %v59, %v36
  %v61 = vshrl.u32 %v60, 3
  %v62 = vand.u32 %v60, 7
  %v63 = vsub.s32 0, %v62
  %v64 = vsel %vm58, %v63, %v62
  %vm65 = vcmp.lt.s32.totalorder %v37, 0
  %v66 = vsub.s32 0, %v37
  %v67 = vsel %vm65, %v66, %v37
  %v68 = vshrl.u32 %v67, 3
  %v69 = vand.u32 %v67, 7
  %v70 = vsub.s32 0, %v69
  %v71 = vsel %vm65, %v70, %v69
  %vm72 = vcmp.lt.s32.totalorder %v38, 0
  %v73 = vsub.s32 0, %v38
  %v74 = vsel %vm72, %v73, %v38
  %v75 = vshrl.u32 %v74, 3
  %v76 = vand.u32 %v74, 7
  %v77 = vsub.s32 0, %v76
  %v78 = vsel %vm72, %v77, %v76
  %vm79 = vcmp.lt.s32.totalorder %v39, 0
  %v80 = vsub.s32 0, %v39
  %v81 = vsel %vm79, %v80, %v39
  %v82 = vshrl.u32 %v81, 3
  %v83 = vand.u32 %v81, 7
  %v84 = vsub.s32 0, %v83
  %v85 = vsel %vm79, %v84, %v83
  %vm86 = vcmp.lt.s32.totalorder %v40, 0
  %v87 = vsub.s32 0, %v40
  %v88 = vsel %vm86, %v87, %v40
  %v89 = vshrl.u32 %v88, 3
  %v90 = vand.u32 %v88, 7
  %v91 = vsub.s32 0, %v90
  %v92 = vsel %vm86, %v91, %v90
  %vm93 = vcmp.lt.s32.totalorder %v41, 0
  %v94 = vsub.s32 0, %v41
  %v95 = vsel %vm93, %v94, %v41
  %v96 = vshrl.u32 %v95, 3
  %v97 = vand.u32 %v95, 7
  %v98 = vsub.s32 0, %v97
  %v99 = vsel %vm93, %v98, %v97
  %vm100 = vcmp.lt.s32.totalorder %v42, 0
  %v101 = vsub.s32 0, %v42
  %v102 = vsel %vm100, %v101, %v42
  %v103 = vshrl.u32 %v102, 3
  %v104 = vand.u32 %v102, 7
  %v105 = vsub.s32 0, %v104
  %v106 = vsel %vm100, %v105, %v104
  %vm107 = vcmp.lt.s32.totalorder %v43, 0
  %v108 = vsub.s32 0, %v43
  %v109 = vsel %vm107, %v108, %v43
  %v110 = vshrl.u32 %v109, 3
  %v111 = vand.u32 %v109, 7
  %v112 = vsub.s32 0, %v111
  %v113 = vsel %vm107, %v112, %v111
  %vm114 = vcmp.lt.s32.totalorder %v44, 0
  %v115 = vsub.s32 0, %v44
  %v116 = vsel %vm114, %v115, %v44
  %v117 = vshrl.u32 %v116, 3
  %v118 = vand.u32 %v116, 7
  %v119 = vsub.s32 0, %v118
  %v120 = vsel %vm114, %v119, %v118
  %vm121 = vcmp.lt.s32.totalorder %v45, 0
  %v122 = vsub.s32 0, %v45
  %v123 = vsel %vm121, %v122, %v45
  %v124 = vshrl.u32 %v123, 3
  %v125 = vand.u32 %v123, 7
  %v126 = vsub.s32 0, %v125
  %v127 = vsel %vm121, %v126, %v125
  %vm128 = vcmp.lt.s32.totalorder %v46, 0
  %v129 = vsub.s32 0, %v46
  %v130 = vsel %vm128, %v129, %v46
  %v131 = vshrl.u32 %v130, 3
  %v132 = vand.u32 %v130, 7
  %v133 = vsub.s32 0, %v132
  %v134 = vsel %vm128, %v133, %v132
  %vm135 = vcmp.lt.s32.totalorder %v47, 0
  %v136 = vsub.s32 0, %v47
  %v137 = vsel %vm135, %v136, %v47
  %v138 = vshrl.u32 %v137, 3
  %v139 = vand.u32 %v137, 7
  %v140 = vsub.s32 0, %v139
  %v141 = vsel %vm135, %v140, %v139
  %vm142 = vcmp.lt.s32.totalorder %v48, 0
  %v143 = vsub.s32 0, %v48
  %v144 = vsel %vm142, %v143, %v48
  %v145 = vshrl.u32 %v144, 3
  %v146 = vand.u32 %v144, 7
  %v147 = vsub.s32 0, %v146
  %v148 = vsel %vm142, %v147, %v146
  %vm149 = vcmp.lt.s32.totalorder %v49, 0
  %v150 = vsub.s32 0, %v49
  %v151 = vsel %vm149, %v150, %v49
  %v152 = vshrl.u32 %v151, 3
  %v153 = vand.u32 %v151, 7
  %v154 = vsub.s32 0, %v153
  %v155 = vsel %vm149, %v154, %v153
  %vm156 = vcmp.lt.s32.totalorder %v50, 0
  %v157 = vsub.s32 0, %v50
  %v158 = vsel %vm156, %v157, %v50
  %v159 = vshrl.u32 %v158, 3
  %v160 = vand.u32 %v158, 7
  %v161 = vsub.s32 0, %v160
  %v162 = vsel %vm156, %v161, %v160
  %vm163 = vcmp.ne.s32.totalorder %v57, 0
  %vm164 = vcmp.ne.s32.totalorder %v64, 0
  %vm165 = vcmp.ne.s32.totalorder %v71, 0
  %vm166 = vcmp.ne.s32.totalorder %v78, 0
  %vm167 = vcmp.ne.s32.totalorder %v85, 0
  %vm168 = vcmp.ne.s32.totalorder %v92, 0
  %vm169 = vcmp.ne.s32.totalorder %v99, 0
  %vm170 = vcmp.ne.s32.totalorder %v106, 0
  %vm171 = vcmp.ne.s32.totalorder %v113, 0
  %vm172 = vcmp.ne.s32.totalorder %v120, 0
  %vm173 = vcmp.ne.s32.totalorder %v127, 0
  %vm174 = vcmp.ne.s32.totalorder %v134, 0
  %vm175 = vcmp.ne.s32.totalorder %v141, 0
  %vm176 = vcmp.ne.s32.totalorder %v148, 0
  %vm177 = vcmp.ne.s32.totalorder %v155, 0
  %vm178 = vcmp.ne.s32.totalorder %v162, 0
  %vm179 = vcmp.lt.s32.totalorder %v57, 0
  %vm180 = vcmp.lt.s32.totalorder %v64, 0
  %vm181 = vcmp.lt.s32.totalorder %v71, 0
  %vm182 = vcmp.lt.s32.totalorder %v78, 0
  %vm183 = vcmp.lt.s32.totalorder %v85, 0
  %vm184 = vcmp.lt.s32.totalorder %v92, 0
  %vm185 = vcmp.lt.s32.totalorder %v99, 0
  %vm186 = vcmp.lt.s32.totalorder %v106, 0
  %vm187 = vcmp.lt.s32.totalorder %v113, 0
  %vm188 = vcmp.lt.s32.totalorder %v120, 0
  %vm189 = vcmp.lt.s32.totalorder %v127, 0
  %vm190 = vcmp.lt.s32.totalorder %v134, 0
  %vm191 = vcmp.lt.s32.totalorder %v141, 0
  %vm192 = vcmp.lt.s32.totalorder %v148, 0
  %vm193 = vcmp.lt.s32.totalorder %v155, 0
  %vm194 = vcmp.lt.s32.totalorder %v162, 0
  %vm195 = vmand %vm179, %vm163
  %vm196 = vmand %vm180, %vm164
  %vm197 = vmand %vm181, %vm165
  %vm198 = vmand %vm182, %vm166
  %vm199 = vmand %vm183, %vm167
  %vm200 = vmand %vm184, %vm168
  %vm201 = vmand %vm185, %vm169
  %vm202 = vmand %vm186, %vm170
  %vm203 = vmand %vm187, %vm171
  %vm204 = vmand %vm188, %vm172
  %vm205 = vmand %vm189, %vm173
  %vm206 = vmand %vm190, %vm174
  %vm207 = vmand %vm191, %vm175
  %vm208 = vmand %vm192, %vm176
  %vm209 = vmand %vm193, %vm177
  %vm210 = vmand %vm194, %vm178
  %v211 = vadd.s32 %v57, 8
  %v212 = vadd.s32 %v64, 8
  %v213 = vadd.s32 %v71, 8
  %v214 = vadd.s32 %v78, 8
  %v215 = vadd.s32 %v85, 8
  %v216 = vadd.s32 %v92, 8
  %v217 = vadd.s32 %v99, 8
  %v218 = vadd.s32 %v106, 8
  %v219 = vadd.s32 %v113, 8
  %v220 = vadd.s32 %v120, 8
  %v221 = vadd.s32 %v127, 8
  %v222 = vadd.s32 %v134, 8
  %v223 = vadd.s32 %v141, 8
  %v224 = vadd.s32 %v148, 8
  %v225 = vadd.s32 %v155, 8
  %v226 = vadd.s32 %v162, 8
  %v227 = vsel %vm195, %v211, %v57
  %v228 = vsel %vm196, %v212, %v64
  %v229 = vsel %vm197, %v213, %v71
  %v230 = vsel %vm198, %v214, %v78
  %v231 = vsel %vm199, %v215, %v85
  %v232 = vsel %vm200, %v216, %v92
  %v233 = vsel %vm201, %v217, %v99
  %v234 = vsel %vm202, %v218, %v106
  %v235 = vsel %vm203, %v219, %v113
  %v236 = vsel %vm204, %v220, %v120
  %v237 = vsel %vm205, %v221, %v127
  %v238 = vsel %vm206, %v222, %v134
  %v239 = vsel %vm207, %v223, %v141
  %v240 = vsel %vm208, %v224, %v148
  %v241 = vsel %vm209, %v225, %v155
  %v242 = vsel %vm210, %v226, %v162
  %vm243 = vcmp.gt.s32.totalorder %v227, 0
  %vm244 = vcmp.gt.s32.totalorder %v228, 0
  %vm245 = vcmp.gt.s32.totalorder %v229, 0
  %vm246 = vcmp.gt.s32.totalorder %v230, 0
  %vm247 = vcmp.gt.s32.totalorder %v231, 0
  %vm248 = vcmp.gt.s32.totalorder %v232, 0
  %vm249 = vcmp.gt.s32.totalorder %v233, 0
  %vm250 = vcmp.gt.s32.totalorder %v234, 0
  %vm251 = vcmp.gt.s32.totalorder %v235, 0
  %vm252 = vcmp.gt.s32.totalorder %v236, 0
  %vm253 = vcmp.gt.s32.totalorder %v237, 0
  %vm254 = vcmp.gt.s32.totalorder %v238, 0
  %vm255 = vcmp.gt.s32.totalorder %v239, 0
  %vm256 = vcmp.gt.s32.totalorder %v240, 0
  %vm257 = vcmp.gt.s32.totalorder %v241, 0
  %vm258 = vcmp.gt.s32.totalorder %v242, 0
  %v259 = vrot.slane %v18, 7
  %v260 = vrot.slane %v19, 7
  %v261 = vrot.slane %v20, 7
  %v262 = vrot.slane %v21, 7
  %v263 = vrot.slane %v22, 7
  %v264 = vrot.slane %v23, 7
  %v265 = vrot.slane %v24, 7
  %v266 = vrot.slane %v25, 7
  %v267 = vrot.slane %v26, 7
  %v268 = vrot.slane %v27, 7
  %v269 = vrot.slane %v28, 7
  %v270 = vrot.slane %v29, 7
  %v271 = vrot.slane %v30, 7
  %v272 = vrot.slane %v31, 7
  %v273 = vrot.slane %v32, 7
  %v274 = vrot.slane %v33, 7
  %vm275 = vcmp.lt.s32.totalorder %v35, 1
  %v276 = vsel %vm275, %v273, %v274
  %v277 = vsel %vm275, %v272, %v273
  %v278 = vsel %vm275, %v271, %v272
  %v279 = vsel %vm275, %v270, %v271
  %v280 = vsel %vm275, %v269, %v270
  %v281 = vsel %vm275, %v268, %v269
  %v282 = vsel %vm275, %v267, %v268
  %v283 = vsel %vm275, %v266, %v267
  %v284 = vsel %vm275, %v265, %v266
  %v285 = vsel %vm275, %v264, %v265
  %v286 = vsel %vm275, %v263, %v264
  %v287 = vsel %vm275, %v262, %v263
  %v288 = vsel %vm275, %v261, %v262
  %v289 = vsel %vm275, %v260, %v261
  %v290 = vsel %vm275, %v259, %v260
  %v291 = vsel %vm275, %v274, %v259
  %v292 = vsel %vm243, 1, 0
  %v293 = vsel %vm244, 1, 0
  %v294 = vsel %vm245, 1, 0
  %v295 = vsel %vm246, 1, 0
  %v296 = vsel %vm247, 1, 0
  %v297 = vsel %vm248, 1, 0
  %v298 = vsel %vm249, 1, 0
  %v299 = vsel %vm250, 1, 0
  %v300 = vsel %vm251, 1, 0
  %v301 = vsel %vm252, 1, 0
  %v302 = vsel %vm253, 1, 0
  %v303 = vsel %vm254, 1, 0
  %v304 = vsel %vm255, 1, 0
  %v305 = vsel %vm256, 1, 0
  %v306 = vsel %vm257, 1, 0
  %v307 = vsel %vm258, 1, 0
  %vm308 = vcmp.eq.s32.totalorder %v292, 1
  %vm309 = vcmp.eq.s32.totalorder %v293, 1
  %vm310 = vcmp.eq.s32.totalorder %v294, 1
  %vm311 = vcmp.eq.s32.totalorder %v295, 1
  %vm312 = vcmp.eq.s32.totalorder %v296, 1
  %vm313 = vcmp.eq.s32.totalorder %v297, 1
  %vm314 = vcmp.eq.s32.totalorder %v298, 1
  %vm315 = vcmp.eq.s32.totalorder %v299, 1
  %vm316 = vcmp.eq.s32.totalorder %v300, 1
  %vm317 = vcmp.eq.s32.totalorder %v301, 1
  %vm318 = vcmp.eq.s32.totalorder %v302, 1
  %vm319 = vcmp.eq.s32.totalorder %v303, 1
  %vm320 = vcmp.eq.s32.totalorder %v304, 1
  %vm321 = vcmp.eq.s32.totalorder %v305, 1
  %vm322 = vcmp.eq.s32.totalorder %v306, 1
  %vm323 = vcmp.eq.s32.totalorder %v307, 1
  %v324 = vsel %vm308, %v291, 0.0
  %v325 = vsel %vm309, %v290, 0.0
  %v326 = vsel %vm310, %v289, 0.0
  %v327 = vsel %vm311, %v288, 0.0
  %v328 = vsel %vm312, %v287, 0.0
  %v329 = vsel %vm313, %v286, 0.0
  %v330 = vsel %vm314, %v285, 0.0
  %v331 = vsel %vm315, %v284, 0.0
  %v332 = vsel %vm316, %v283, 0.0
  %v333 = vsel %vm317, %v282, 0.0
  %v334 = vsel %vm318, %v281, 0.0
  %v335 = vsel %vm319, %v280, 0.0
  %v336 = vsel %vm320, %v279, 0.0
  %v337 = vsel %vm321, %v278, 0.0
  %v338 = vsel %vm322, %v277, 0.0
  %v339 = vsel %vm323, %v276, 0.0
  %vm340 = vcmp.lt.s32.totalorder %v227, 7
  %vm341 = vcmp.lt.s32.totalorder %v228, 7
  %vm342 = vcmp.lt.s32.totalorder %v229, 7
  %vm343 = vcmp.lt.s32.totalorder %v230, 7
  %vm344 = vcmp.lt.s32.totalorder %v231, 7
  %vm345 = vcmp.lt.s32.totalorder %v232, 7
  %vm346 = vcmp.lt.s32.totalorder %v233, 7
  %vm347 = vcmp.lt.s32.totalorder %v234, 7
  %vm348 = vcmp.lt.s32.totalorder %v235, 7
  %vm349 = vcmp.lt.s32.totalorder %v236, 7
  %vm350 = vcmp.lt.s32.totalorder %v237, 7
  %vm351 = vcmp.lt.s32.totalorder %v238, 7
  %vm352 = vcmp.lt.s32.totalorder %v239, 7
  %vm353 = vcmp.lt.s32.totalorder %v240, 7
  %vm354 = vcmp.lt.s32.totalorder %v241, 7
  %vm355 = vcmp.lt.s32.totalorder %v242, 7
  %v356 = vrot.slane %v18, 1
  %v357 = vrot.slane %v19, 1
  %v358 = vrot.slane %v20, 1
  %v359 = vrot.slane %v21, 1
  %v360 = vrot.slane %v22, 1
  %v361 = vrot.slane %v23, 1
  %v362 = vrot.slane %v24, 1
  %v363 = vrot.slane %v25, 1
  %v364 = vrot.slane %v26, 1
  %v365 = vrot.slane %v27, 1
  %v366 = vrot.slane %v28, 1
  %v367 = vrot.slane %v29, 1
  %v368 = vrot.slane %v30, 1
  %v369 = vrot.slane %v31, 1
  %v370 = vrot.slane %v32, 1
  %v371 = vrot.slane %v33, 1
  %vm372 = vcmp.lt.s32.totalorder %v35, 7
  %v373 = vsel %vm372, %v370, %v371
  %v374 = vsel %vm372, %v369, %v370
  %v375 = vsel %vm372, %v368, %v369
  %v376 = vsel %vm372, %v367, %v368
  %v377 = vsel %vm372, %v366, %v367
  %v378 = vsel %vm372, %v365, %v366
  %v379 = vsel %vm372, %v364, %v365
  %v380 = vsel %vm372, %v363, %v364
  %v381 = vsel %vm372, %v362, %v363
  %v382 = vsel %vm372, %v361, %v362
  %v383 = vsel %vm372, %v360, %v361
  %v384 = vsel %vm372, %v359, %v360
  %v385 = vsel %vm372, %v358, %v359
  %v386 = vsel %vm372, %v357, %v358
  %v387 = vsel %vm372, %v356, %v357
  %v388 = vsel %vm372, %v371, %v356
  %v389 = vsel %vm340, 1, 0
  %v390 = vsel %vm341, 1, 0
  %v391 = vsel %vm342, 1, 0
  %v392 = vsel %vm343, 1, 0
  %v393 = vsel %vm344, 1, 0
  %v394 = vsel %vm345, 1, 0
  %v395 = vsel %vm346, 1, 0
  %v396 = vsel %vm347, 1, 0
  %v397 = vsel %vm348, 1, 0
  %v398 = vsel %vm349, 1, 0
  %v399 = vsel %vm350, 1, 0
  %v400 = vsel %vm351, 1, 0
  %v401 = vsel %vm352, 1, 0
  %v402 = vsel %vm353, 1, 0
  %v403 = vsel %vm354, 1, 0
  %v404 = vsel %vm355, 1, 0
  %vm405 = vcmp.eq.s32.totalorder %v389, 1
  %vm406 = vcmp.eq.s32.totalorder %v390, 1
  %vm407 = vcmp.eq.s32.totalorder %v391, 1
  %vm408 = vcmp.eq.s32.totalorder %v392, 1
  %vm409 = vcmp.eq.s32.totalorder %v393, 1
  %vm410 = vcmp.eq.s32.totalorder %v394, 1
  %vm411 = vcmp.eq.s32.totalorder %v395, 1
  %vm412 = vcmp.eq.s32.totalorder %v396, 1
  %vm413 = vcmp.eq.s32.totalorder %v397, 1
  %vm414 = vcmp.eq.s32.totalorder %v398, 1
  %vm415 = vcmp.eq.s32.totalorder %v399, 1
  %vm416 = vcmp.eq.s32.totalorder %v400, 1
  %vm417 = vcmp.eq.s32.totalorder %v401, 1
  %vm418 = vcmp.eq.s32.totalorder %v402, 1
  %vm419 = vcmp.eq.s32.totalorder %v403, 1
  %vm420 = vcmp.eq.s32.totalorder %v404, 1
  %v421 = vsel %vm405, %v387, 0.0
  %v422 = vsel %vm406, %v386, 0.0
  %v423 = vsel %vm407, %v385, 0.0
  %v424 = vsel %vm408, %v384, 0.0
  %v425 = vsel %vm409, %v383, 0.0
  %v426 = vsel %vm410, %v382, 0.0
  %v427 = vsel %vm411, %v381, 0.0
  %v428 = vsel %vm412, %v380, 0.0
  %v429 = vsel %vm413, %v379, 0.0
  %v430 = vsel %vm414, %v378, 0.0
  %v431 = vsel %vm415, %v377, 0.0
  %v432 = vsel %vm416, %v376, 0.0
  %v433 = vsel %vm417, %v375, 0.0
  %v434 = vsel %vm418, %v374, 0.0
  %v435 = vsel %vm419, %v373, 0.0
  %v436 = vsel %vm420, %v388, 0.0
  %453 = vrot.lane.b32.xlu0 %v18, 4
  %v454 = vpop.permute.xlu0 %453
  %455 = vrot.lane.b32.xlu0 %v19, 4
  %v456 = vpop.permute.xlu0 %455
  %457 = vrot.lane.b32.xlu0 %v20, 4
  %v458 = vpop.permute.xlu0 %457
  %459 = vrot.lane.b32.xlu0 %v21, 4
  %v460 = vpop.permute.xlu0 %459
  %461 = vrot.lane.b32.xlu0 %v22, 4
  %v462 = vpop.permute.xlu0 %461
  %463 = vrot.lane.b32.xlu0 %v23, 4
  %v464 = vpop.permute.xlu0 %463
  %465 = vrot.lane.b32.xlu0 %v24, 4
  %v466 = vpop.permute.xlu0 %465
  %467 = vrot.lane.b32.xlu0 %v25, 4
  %v468 = vpop.permute.xlu0 %467
  %469 = vrot.lane.b32.xlu0 %v26, 4
  %v470 = vpop.permute.xlu0 %469
  %471 = vrot.lane.b32.xlu0 %v27, 4
  %v472 = vpop.permute.xlu0 %471
  %473 = vrot.lane.b32.xlu0 %v28, 4
  %v474 = vpop.permute.xlu0 %473
  %475 = vrot.lane.b32.xlu0 %v29, 4
  %v476 = vpop.permute.xlu0 %475
  %477 = vrot.lane.b32.xlu0 %v30, 4
  %v478 = vpop.permute.xlu0 %477
  %479 = vrot.lane.b32.xlu0 %v31, 4
  %v480 = vpop.permute.xlu0 %479
  %481 = vrot.lane.b32.xlu0 %v32, 4
  %v482 = vpop.permute.xlu0 %481
  %483 = vrot.lane.b32.xlu0 %v33, 4
  %v484 = vpop.permute.xlu0 %483
  %517 = vrot.lane.b32.xlu0 %v421, 8
  %v518 = vpop.permute.xlu0 %517
  %519 = vrot.lane.b32.xlu0 %v422, 8
  %v520 = vpop.permute.xlu0 %519
  %521 = vrot.lane.b32.xlu0 %v423, 8
  %v522 = vpop.permute.xlu0 %521
  %523 = vrot.lane.b32.xlu0 %v424, 8
  %v524 = vpop.permute.xlu0 %523
  %525 = vrot.lane.b32.xlu0 %v425, 8
  %v526 = vpop.permute.xlu0 %525
  %527 = vrot.lane.b32.xlu0 %v426, 8
  %v528 = vpop.permute.xlu0 %527
  %529 = vrot.lane.b32.xlu0 %v427, 8
  %v530 = vpop.permute.xlu0 %529
  %531 = vrot.lane.b32.xlu0 %v428, 8
  %v532 = vpop.permute.xlu0 %531
  %533 = vrot.lane.b32.xlu0 %v429, 8
  %v534 = vpop.permute.xlu0 %533
  %535 = vrot.lane.b32.xlu0 %v430, 8
  %v536 = vpop.permute.xlu0 %535
  %537 = vrot.lane.b32.xlu0 %v431, 8
  %v538 = vpop.permute.xlu0 %537
  %539 = vrot.lane.b32.xlu0 %v432, 8
  %v540 = vpop.permute.xlu0 %539
  %541 = vrot.lane.b32.xlu0 %v433, 8
  %v542 = vpop.permute.xlu0 %541
  %543 = vrot.lane.b32.xlu0 %v434, 8
  %v544 = vpop.permute.xlu0 %543
  %545 = vrot.lane.b32.xlu0 %v435, 8
  %v546 = vpop.permute.xlu0 %545
  %547 = vrot.lane.b32.xlu0 %v436, 8
  %v548 = vpop.permute.xlu0 %547
  %vm565 = vcmask 31744
  %v566 = vsel %vm565, %v324, %v454
  %v567 = vsel %vm565, %v325, %v456
  %v568 = vsel %vm565, %v326, %v458
  %v569 = vsel %vm565, %v327, %v460
  %v570 = vsel %vm565, %v328, %v462
  %v571 = vsel %vm565, %v329, %v464
  %v572 = vsel %vm565, %v330, %v466
  %v573 = vsel %vm565, %v331, %v468
  %v574 = vsel %vm565, %v332, %v470
  %v575 = vsel %vm565, %v333, %v472
  %v576 = vsel %vm565, %v334, %v474
  %v577 = vsel %vm565, %v335, %v476
  %v578 = vsel %vm565, %v336, %v478
  %v579 = vsel %vm565, %v337, %v480
  %v580 = vsel %vm565, %v338, %v482
  %v581 = vsel %vm565, %v339, %v484
  %vm582 = vcmask 64512
  %v583 = vsel %vm582, %v566, %v518
  %v584 = vsel %vm582, %v567, %v520
  %v585 = vsel %vm582, %v568, %v522
  %v586 = vsel %vm582, %v569, %v524
  %v587 = vsel %vm582, %v570, %v526
  %v588 = vsel %vm582, %v571, %v528
  %v589 = vsel %vm582, %v572, %v530
  %v590 = vsel %vm582, %v573, %v532
  %v591 = vsel %vm582, %v574, %v534
  %v592 = vsel %vm582, %v575, %v536
  %v593 = vsel %vm582, %v576, %v538
  %v594 = vsel %vm582, %v577, %v540
  %v595 = vsel %vm582, %v578, %v542
  %v596 = vsel %vm582, %v579, %v544
  %v597 = vsel %vm582, %v580, %v546
  %v598 = vsel %vm582, %v581, %v548
  %v599 = vpack.c.bf16 %v584, %v583
  %v600 = vpack.c.bf16 %v586, %v585
  %v601 = vpack.c.bf16 %v588, %v587
  %v602 = vpack.c.bf16 %v590, %v589
  %v603 = vpack.c.bf16 %v592, %v591
  %v604 = vpack.c.bf16 %v594, %v593
  %v605 = vpack.c.bf16 %v596, %v595
  %v606 = vpack.c.bf16 %v598, %v597
  %v607 = vld [vmem:[%s1] sm:$0xf]
  %v608 = vld [vmem:[%s1 + $0x4] sm:$0x3]
  %v609 = vld [vmem:[%s2] sm:$0x1]
  %v611 = vlaneseq
  %v612 = vshrl.u32 %v611, 7
  %v613 = vsub.s32 0, %v612
  %v614 = vrot.slane %v609, %v613
  %v618 = vunpack.c.l.b16 %v607
  %v619 = vunpack.c.l.b16 %v608
  %v620 = vpack.c.b16 %v619, %v618
  %vm621 = vcmask 97280
  %v623 = vsel %vm621, %v599, 0
  %v626 = vsel %vm621, %v600, 0
  %v629 = vsel %vm621, %v601, 0
  %v632 = vsel %vm621, %v602, 0
  %v635 = vsel %vm621, %v603, 0
  %v638 = vsel %vm621, %v604, 0
  %v641 = vsel %vm621, %v605, 0
  %v644 = vsel %vm621, %v606, 0
  %vm646 = vcmask 1045504
  %v648 = vsel %vm646, %v620, 0
  %650 = vmatprep.subr.bf16.mxu0 0
  %651 = vmatpush1.bf16.msra.mxu0 %v648
  %652 = vmatprep.subr.bf16.mxu0 0
  %653 = vmatpush1.bf16.msra.mxu0 0
  %654 = vmatprep.subr.bf16.mxu0 0
  %655 = vmatpush1.bf16.msra.mxu0 0
  %656 = vmatprep.subr.bf16.mxu0 0
  %657 = vmatpush1.bf16.msra.mxu0 0
  %658 = vmatprep.subr.bf16.mxu0 0
  %659 = vmatpush1.bf16.msra.mxu0 0
  %660 = vmatprep.subr.bf16.mxu0 0
  %661 = vmatpush1.bf16.msra.mxu0 0
  %662 = vmatprep.subr.bf16.mxu0 0
  %663 = vmatpush1.bf16.msra.mxu0 0
  %664 = vmatprep.subr.bf16.mxu0 0
  %665 = vmatpush1.bf16.msra.mxu0 0
  %666 = vmatprep.subr.bf16.mxu0 0
  %667 = vmatpush1.bf16.msra.mxu0 0
  %668 = vmatprep.subr.bf16.mxu0 0
  %669 = vmatpush1.bf16.msra.mxu0 0
  %670 = vmatprep.subr.bf16.mxu0 0
  %671 = vmatpush1.bf16.msra.mxu0 0
  %672 = vmatprep.subr.bf16.mxu0 0
  %673 = vmatpush1.bf16.msra.mxu0 0
  %674 = vmatprep.subr.bf16.mxu0 0
  %675 = vmatpush1.bf16.msra.mxu0 0
  %676 = vmatprep.subr.bf16.mxu0 0
  %677 = vmatpush1.bf16.msra.mxu0 0
  %678 = vmatprep.subr.bf16.mxu0 0
  %679 = vmatpush1.bf16.msra.mxu0 0
  %680 = vmatprep.subr.bf16.mxu0 0
  %681 = vmatpush1.bf16.msra.mxu0 0
  %682 = vmatprep.mubr.bf16.mxu0 0
  %683 = vmatmul.mubr.bf16.gmra.mrb[0].mxu0 %v623
  %v684 = vpop.f32.mrb[0].mxu0
  %v685 = vadd.f32 %v614, %v684
  %v686 = vpop.f32.mrb[0].mxu0
  %v687 = vpop.f32.mrb[0].mxu0
  %v688 = vadd.f32 %v614, %v687
  %v689 = vpop.f32.mrb[0].mxu0
  %690 = vmatprep.mubr.bf16.mxu0 0
  %691 = vmatmul.mubr.bf16.gmra.mrb[0].mxu0 %v626
  %v692 = vpop.f32.mrb[0].mxu0
  %v693 = vadd.f32 %v614, %v692
  %v694 = vpop.f32.mrb[0].mxu0
  %v695 = vpop.f32.mrb[0].mxu0
  %v696 = vadd.f32 %v614, %v695
  %v697 = vpop.f32.mrb[0].mxu0
  %698 = vmatprep.mubr.bf16.mxu0 0
  %699 = vmatmul.mubr.bf16.gmra.mrb[0].mxu0 %v629
  %v700 = vpop.f32.mrb[0].mxu0
  %v701 = vadd.f32 %v614, %v700
  %v702 = vpop.f32.mrb[0].mxu0
  %v703 = vpop.f32.mrb[0].mxu0
  %v704 = vadd.f32 %v614, %v703
  %v705 = vpop.f32.mrb[0].mxu0
  %706 = vmatprep.mubr.bf16.mxu0 0
  %707 = vmatmul.mubr.bf16.gmra.mrb[0].mxu0 %v632
  %v708 = vpop.f32.mrb[0].mxu0
  %v709 = vadd.f32 %v614, %v708
  %v710 = vpop.f32.mrb[0].mxu0
  %v711 = vpop.f32.mrb[0].mxu0
  %v712 = vadd.f32 %v614, %v711
  %v713 = vpop.f32.mrb[0].mxu0
  %714 = vmatprep.mubr.bf16.mxu0 0
  %715 = vmatmul.mubr.bf16.gmra.mrb[0].mxu0 %v635
  %v716 = vpop.f32.mrb[0].mxu0
  %v717 = vadd.f32 %v614, %v716
  %v718 = vpop.f32.mrb[0].mxu0
  %v719 = vpop.f32.mrb[0].mxu0
  %v720 = vadd.f32 %v614, %v719
  %v721 = vpop.f32.mrb[0].mxu0
  %722 = vmatprep.mubr.bf16.mxu0 0
  %723 = vmatmul.mubr.bf16.gmra.mrb[0].mxu0 %v638
  %v724 = vpop.f32.mrb[0].mxu0
  %v725 = vadd.f32 %v614, %v724
  %v726 = vpop.f32.mrb[0].mxu0
  %v727 = vpop.f32.mrb[0].mxu0
  %v728 = vadd.f32 %v614, %v727
  %v729 = vpop.f32.mrb[0].mxu0
  %730 = vmatprep.mubr.bf16.mxu0 0
  %731 = vmatmul.mubr.bf16.gmra.mrb[0].mxu0 %v641
  %v732 = vpop.f32.mrb[0].mxu0
  %v733 = vadd.f32 %v614, %v732
  %v734 = vpop.f32.mrb[0].mxu0
  %v735 = vpop.f32.mrb[0].mxu0
  %v736 = vadd.f32 %v614, %v735
  %v737 = vpop.f32.mrb[0].mxu0
  %738 = vmatprep.mubr.bf16.mxu0 0
  %739 = vmatmul.mubr.bf16.gmra.mrb[0].mxu0 %v644
  %v740 = vpop.f32.mrb[0].mxu0
  %v741 = vadd.f32 %v614, %v740
  %v742 = vpop.f32.mrb[0].mxu0
  %v743 = vpop.f32.mrb[0].mxu0
  %v744 = vadd.f32 %v614, %v743
  %v745 = vpop.f32.mrb[0].mxu0
  %746 = vdwg.mxu0
  %v747 = vxor.u32 %v685, 2147483648
  %v748 = vxor.u32 %v688, 2147483648
  %v749 = vxor.u32 %v693, 2147483648
  %v750 = vxor.u32 %v696, 2147483648
  %v751 = vxor.u32 %v701, 2147483648
  %v752 = vxor.u32 %v704, 2147483648
  %v753 = vxor.u32 %v709, 2147483648
  %v754 = vxor.u32 %v712, 2147483648
  %v755 = vxor.u32 %v717, 2147483648
  %v756 = vxor.u32 %v720, 2147483648
  %v757 = vxor.u32 %v725, 2147483648
  %v758 = vxor.u32 %v728, 2147483648
  %v759 = vxor.u32 %v733, 2147483648
  %v760 = vxor.u32 %v736, 2147483648
  %v761 = vxor.u32 %v741, 2147483648
  %v762 = vxor.u32 %v744, 2147483648
  %v763 = vmul.f32 %v747, 1.442695
  %v764 = vpow.pop %v763
  %v765 = vmul.f32 %v748, 1.442695
  %v766 = vpow.pop %v765
  %v767 = vmul.f32 %v749, 1.442695
  %v768 = vpow.pop %v767
  %v769 = vmul.f32 %v750, 1.442695
  %v770 = vpow.pop %v769
  %v771 = vmul.f32 %v751, 1.442695
  %v772 = vpow.pop %v771
  %v773 = vmul.f32 %v752, 1.442695
  %v774 = vpow.pop %v773
  %v775 = vmul.f32 %v753, 1.442695
  %v776 = vpow.pop %v775
  %v777 = vmul.f32 %v754, 1.442695
  %v778 = vpow.pop %v777
  %v779 = vmul.f32 %v755, 1.442695
  %v780 = vpow.pop %v779
  %v781 = vmul.f32 %v756, 1.442695
  %v782 = vpow.pop %v781
  %v783 = vmul.f32 %v757, 1.442695
  %v784 = vpow.pop %v783
  %v785 = vmul.f32 %v758, 1.442695
  %v786 = vpow.pop %v785
  %v787 = vmul.f32 %v759, 1.442695
  %v788 = vpow.pop %v787
  %v789 = vmul.f32 %v760, 1.442695
  %v790 = vpow.pop %v789
  %v791 = vmul.f32 %v761, 1.442695
  %v792 = vpow.pop %v791
  %v793 = vmul.f32 %v762, 1.442695
  %v794 = vpow.pop %v793
  %v795 = vadd.f32 %v764, 1.0
  %v796 = vadd.f32 %v766, 1.0
  %v797 = vadd.f32 %v768, 1.0
  %v798 = vadd.f32 %v770, 1.0
  %v799 = vadd.f32 %v772, 1.0
  %v800 = vadd.f32 %v774, 1.0
  %v801 = vadd.f32 %v776, 1.0
  %v802 = vadd.f32 %v778, 1.0
  %v803 = vadd.f32 %v780, 1.0
  %v804 = vadd.f32 %v782, 1.0
  %v805 = vadd.f32 %v784, 1.0
  %v806 = vadd.f32 %v786, 1.0
  %v807 = vadd.f32 %v788, 1.0
  %v808 = vadd.f32 %v790, 1.0
  %v809 = vadd.f32 %v792, 1.0
  %v810 = vadd.f32 %v794, 1.0
  %v811 = vrcp.pop %v795
  %v812 = vmul.f32 1.0, %v811
  %v813 = vrcp.pop %v796
  %v814 = vmul.f32 1.0, %v813
  %v815 = vrcp.pop %v797
  %v816 = vmul.f32 1.0, %v815
  %v817 = vrcp.pop %v798
  %v818 = vmul.f32 1.0, %v817
  %v819 = vrcp.pop %v799
  %v820 = vmul.f32 1.0, %v819
  %v821 = vrcp.pop %v800
  %v822 = vmul.f32 1.0, %v821
  %v823 = vrcp.pop %v801
  %v824 = vmul.f32 1.0, %v823
  %v825 = vrcp.pop %v802
  %v826 = vmul.f32 1.0, %v825
  %v827 = vrcp.pop %v803
  %v828 = vmul.f32 1.0, %v827
  %v829 = vrcp.pop %v804
  %v830 = vmul.f32 1.0, %v829
  %v831 = vrcp.pop %v805
  %v832 = vmul.f32 1.0, %v831
  %v833 = vrcp.pop %v806
  %v834 = vmul.f32 1.0, %v833
  %v835 = vrcp.pop %v807
  %v836 = vmul.f32 1.0, %v835
  %v837 = vrcp.pop %v808
  %v838 = vmul.f32 1.0, %v837
  %v839 = vrcp.pop %v809
  %v840 = vmul.f32 1.0, %v839
  %v841 = vrcp.pop %v810
  %v842 = vmul.f32 1.0, %v841
  %859 = vrot.lane.b32.xlu0 %v812, 96
  %v860 = vpop.permute.xlu0 %859
  %861 = vrot.lane.b32.xlu0 %v814, 96
  %v862 = vpop.permute.xlu0 %861
  %863 = vrot.lane.b32.xlu0 %v816, 96
  %v864 = vpop.permute.xlu0 %863
  %865 = vrot.lane.b32.xlu0 %v818, 96
  %v866 = vpop.permute.xlu0 %865
  %867 = vrot.lane.b32.xlu0 %v820, 96
  %v868 = vpop.permute.xlu0 %867
  %869 = vrot.lane.b32.xlu0 %v822, 96
  %v870 = vpop.permute.xlu0 %869
  %871 = vrot.lane.b32.xlu0 %v824, 96
  %v872 = vpop.permute.xlu0 %871
  %873 = vrot.lane.b32.xlu0 %v826, 96
  %v874 = vpop.permute.xlu0 %873
  %875 = vrot.lane.b32.xlu0 %v828, 96
  %v876 = vpop.permute.xlu0 %875
  %877 = vrot.lane.b32.xlu0 %v830, 96
  %v878 = vpop.permute.xlu0 %877
  %879 = vrot.lane.b32.xlu0 %v832, 96
  %v880 = vpop.permute.xlu0 %879
  %881 = vrot.lane.b32.xlu0 %v834, 96
  %v882 = vpop.permute.xlu0 %881
  %883 = vrot.lane.b32.xlu0 %v836, 96
  %v884 = vpop.permute.xlu0 %883
  %885 = vrot.lane.b32.xlu0 %v838, 96
  %v886 = vpop.permute.xlu0 %885
  %887 = vrot.lane.b32.xlu0 %v840, 96
  %v888 = vpop.permute.xlu0 %887
  %889 = vrot.lane.b32.xlu0 %v842, 96
  %v890 = vpop.permute.xlu0 %889
  %v907 = vmul.f32 %v685, %v860
  %v908 = vmul.f32 %v688, %v862
  %v909 = vmul.f32 %v693, %v864
  %v910 = vmul.f32 %v696, %v866
  %v911 = vmul.f32 %v701, %v868
  %v912 = vmul.f32 %v704, %v870
  %v913 = vmul.f32 %v709, %v872
  %v914 = vmul.f32 %v712, %v874
  %v915 = vmul.f32 %v717, %v876
  %v916 = vmul.f32 %v720, %v878
  %v917 = vmul.f32 %v725, %v880
  %v918 = vmul.f32 %v728, %v882
  %v919 = vmul.f32 %v733, %v884
  %v920 = vmul.f32 %v736, %v886
  %v921 = vmul.f32 %v741, %v888
  %v922 = vmul.f32 %v744, %v890
  %v923 = vpack.c.bf16 %v908, %v907
  %v924 = vpack.c.bf16 %v910, %v909
  %v925 = vpack.c.bf16 %v912, %v911
  %v926 = vpack.c.bf16 %v914, %v913
  %v927 = vpack.c.bf16 %v916, %v915
  %v928 = vpack.c.bf16 %v918, %v917
  %v929 = vpack.c.bf16 %v920, %v919
  %v930 = vpack.c.bf16 %v922, %v921
  %v931 = vld [vmem:[%s3] sm:$0xf]
  %v932 = vld [vmem:[%s3 + $0x4] sm:$0xf]
  %v933 = vld [vmem:[%s3 + $0x8] sm:$0xf]
  %v934 = vld [vmem:[%s3 + $0xc] sm:$0xf]
  %v939 = vunpack.c.l.b16 %v931
  %v940 = vunpack.c.l.b16 %v932
  %v941 = vunpack.c.l.b16 %v933
  %v942 = vunpack.c.l.b16 %v934
  %v943 = vpack.c.b16 %v940, %v939
  %v944 = vpack.c.b16 %v942, %v941
  %vm947 = vcmask 261120
  %v949 = vsel %vm947, %v923, 0
  %v952 = vsel %vm947, %v924, 0
  %v955 = vsel %vm947, %v925, 0
  %v958 = vsel %vm947, %v926, 0
  %v961 = vsel %vm947, %v927, 0
  %v964 = vsel %vm947, %v928, 0
  %v967 = vsel %vm947, %v929, 0
  %v970 = vsel %vm947, %v930, 0
  %972 = vmatprep.subr.bf16.mxu0 0
  %973 = vmatpush1.bf16.msra.mxu0 %v943
  %974 = vmatprep.subr.bf16.mxu0 0
  %975 = vmatpush1.bf16.msra.mxu0 %v944
  %976 = vmatprep.subr.bf16.mxu0 0
  %977 = vmatpush1.bf16.msra.mxu0 0
  %978 = vmatprep.subr.bf16.mxu0 0
  %979 = vmatpush1.bf16.msra.mxu0 0
  %980 = vmatprep.subr.bf16.mxu0 0
  %981 = vmatpush1.bf16.msra.mxu0 0
  %982 = vmatprep.subr.bf16.mxu0 0
  %983 = vmatpush1.bf16.msra.mxu0 0
  %984 = vmatprep.subr.bf16.mxu0 0
  %985 = vmatpush1.bf16.msra.mxu0 0
  %986 = vmatprep.subr.bf16.mxu0 0
  %987 = vmatpush1.bf16.msra.mxu0 0
  %988 = vmatprep.subr.bf16.mxu0 0
  %989 = vmatpush1.bf16.msra.mxu0 0
  %990 = vmatprep.subr.bf16.mxu0 0
  %991 = vmatpush1.bf16.msra.mxu0 0
  %992 = vmatprep.subr.bf16.mxu0 0
  %993 = vmatpush1.bf16.msra.mxu0 0
  %994 = vmatprep.subr.bf16.mxu0 0
  %995 = vmatpush1.bf16.msra.mxu0 0
  %996 = vmatprep.subr.bf16.mxu0 0
  %997 = vmatpush1.bf16.msra.mxu0 0
  %998 = vmatprep.subr.bf16.mxu0 0
  %999 = vmatpush1.bf16.msra.mxu0 0
  %1000 = vmatprep.subr.bf16.mxu0 0
  %1001 = vmatpush1.bf16.msra.mxu0 0
  %1002 = vmatprep.subr.bf16.mxu0 0
  %1003 = vmatpush1.bf16.msra.mxu0 0
  %1004 = vmatprep.mubr.bf16.mxu0 0
  %1005 = vmatmul.mubr.bf16.gmra.mrb[0].mxu0 %v949
  %v1006 = vpop.f32.mrb[0].mxu0
  %v1007 = vadd.f32 0.0, %v1006
  %v1008 = vpop.f32.mrb[0].mxu0
  %v1009 = vpop.f32.mrb[0].mxu0
  %v1010 = vadd.f32 0.0, %v1009
  %v1011 = vpop.f32.mrb[0].mxu0
  %1012 = vmatprep.mubr.bf16.mxu0 0
  %1013 = vmatmul.mubr.bf16.gmra.mrb[0].mxu0 %v952
  %v1014 = vpop.f32.mrb[0].mxu0
  %v1015 = vadd.f32 0.0, %v1014
  %v1016 = vpop.f32.mrb[0].mxu0
  %v1017 = vpop.f32.mrb[0].mxu0
  %v1018 = vadd.f32 0.0, %v1017
  %v1019 = vpop.f32.mrb[0].mxu0
  %1020 = vmatprep.mubr.bf16.mxu0 0
  %1021 = vmatmul.mubr.bf16.gmra.mrb[0].mxu0 %v955
  %v1022 = vpop.f32.mrb[0].mxu0
  %v1023 = vadd.f32 0.0, %v1022
  %v1024 = vpop.f32.mrb[0].mxu0
  %v1025 = vpop.f32.mrb[0].mxu0
  %v1026 = vadd.f32 0.0, %v1025
  %v1027 = vpop.f32.mrb[0].mxu0
  %1028 = vmatprep.mubr.bf16.mxu0 0
  %1029 = vmatmul.mubr.bf16.gmra.mrb[0].mxu0 %v958
  %v1030 = vpop.f32.mrb[0].mxu0
  %v1031 = vadd.f32 0.0, %v1030
  %v1032 = vpop.f32.mrb[0].mxu0
  %v1033 = vpop.f32.mrb[0].mxu0
  %v1034 = vadd.f32 0.0, %v1033
  %v1035 = vpop.f32.mrb[0].mxu0
  %1036 = vmatprep.mubr.bf16.mxu0 0
  %1037 = vmatmul.mubr.bf16.gmra.mrb[0].mxu0 %v961
  %v1038 = vpop.f32.mrb[0].mxu0
  %v1039 = vadd.f32 0.0, %v1038
  %v1040 = vpop.f32.mrb[0].mxu0
  %v1041 = vpop.f32.mrb[0].mxu0
  %v1042 = vadd.f32 0.0, %v1041
  %v1043 = vpop.f32.mrb[0].mxu0
  %1044 = vmatprep.mubr.bf16.mxu0 0
  %1045 = vmatmul.mubr.bf16.gmra.mrb[0].mxu0 %v964
  %v1046 = vpop.f32.mrb[0].mxu0
  %v1047 = vadd.f32 0.0, %v1046
  %v1048 = vpop.f32.mrb[0].mxu0
  %v1049 = vpop.f32.mrb[0].mxu0
  %v1050 = vadd.f32 0.0, %v1049
  %v1051 = vpop.f32.mrb[0].mxu0
  %1052 = vmatprep.mubr.bf16.mxu0 0
  %1053 = vmatmul.mubr.bf16.gmra.mrb[0].mxu0 %v967
  %v1054 = vpop.f32.mrb[0].mxu0
  %v1055 = vadd.f32 0.0, %v1054
  %v1056 = vpop.f32.mrb[0].mxu0
  %v1057 = vpop.f32.mrb[0].mxu0
  %v1058 = vadd.f32 0.0, %v1057
  %v1059 = vpop.f32.mrb[0].mxu0
  %1060 = vmatprep.mubr.bf16.mxu0 0
  %1061 = vmatmul.mubr.bf16.gmra.mrb[0].mxu0 %v970
  %v1062 = vpop.f32.mrb[0].mxu0
  %v1063 = vadd.f32 0.0, %v1062
  %v1064 = vpop.f32.mrb[0].mxu0
  %v1065 = vpop.f32.mrb[0].mxu0
  %v1066 = vadd.f32 0.0, %v1065
  %v1067 = vpop.f32.mrb[0].mxu0
  %1068 = vdwg.mxu0
  %v1069 = vpack.c.bf16 %v1010, %v1007
  %v1070 = vpack.c.bf16 %v1018, %v1015
  %v1071 = vpack.c.bf16 %v1026, %v1023
  %v1072 = vpack.c.bf16 %v1034, %v1031
  %v1073 = vpack.c.bf16 %v1042, %v1039
  %v1074 = vpack.c.bf16 %v1050, %v1047
  %v1075 = vpack.c.bf16 %v1058, %v1055
  %v1076 = vpack.c.bf16 %v1066, %v1063
  %v1085 = vunpack.c.l.b16 %v1069
  %v1086 = vunpack.c.h.b16 %v1069
  %v1087 = vunpack.c.l.b16 %v1070
  %v1088 = vunpack.c.h.b16 %v1070
  %v1089 = vunpack.c.l.b16 %v1071
  %v1090 = vunpack.c.h.b16 %v1071
  %v1091 = vunpack.c.l.b16 %v1072
  %v1092 = vunpack.c.h.b16 %v1072
  %v1093 = vunpack.c.l.b16 %v1073
  %v1094 = vunpack.c.h.b16 %v1073
  %v1095 = vunpack.c.l.b16 %v1074
  %v1096 = vunpack.c.h.b16 %v1074
  %v1097 = vunpack.c.l.b16 %v1075
  %v1098 = vunpack.c.h.b16 %v1075
  %v1099 = vunpack.c.l.b16 %v1076
  %v1100 = vunpack.c.h.b16 %v1076
  %v1101 = vpack.c.b16 %v1085, %v1085
  %v1102 = vpack.c.b16 %v1086, %v1086
  %v1103 = vpack.c.b16 %v1087, %v1087
  %v1104 = vpack.c.b16 %v1088, %v1088
  %v1105 = vpack.c.b16 %v1089, %v1089
  %v1106 = vpack.c.b16 %v1090, %v1090
  %v1107 = vpack.c.b16 %v1091, %v1091
  %v1108 = vpack.c.b16 %v1092, %v1092
  %v1109 = vpack.c.b16 %v1093, %v1093
  %v1110 = vpack.c.b16 %v1094, %v1094
  %v1111 = vpack.c.b16 %v1095, %v1095
  %v1112 = vpack.c.b16 %v1096, %v1096
  %v1113 = vpack.c.b16 %v1097, %v1097
  %v1114 = vpack.c.b16 %v1098, %v1098
  %v1115 = vpack.c.b16 %v1099, %v1099
  %v1116 = vpack.c.b16 %v1100, %v1100
  %vm1133 = vcmask 257024
  %1134 = vst.msk [vmem:[%s4] sm:$0xf] %vm1133, %v1101
  %1135 = vst.msk [vmem:[%s4 + $0x4] sm:$0xf] %vm1133, %v1102
  %1136 = vst.msk [vmem:[%s4 + $0x8] sm:$0xf] %vm1133, %v1103
  %1137 = vst.msk [vmem:[%s4 + $0xc] sm:$0xf] %vm1133, %v1104
  %1138 = vst.msk [vmem:[%s4 + $0x10] sm:$0xf] %vm1133, %v1105
  %1139 = vst.msk [vmem:[%s4 + $0x14] sm:$0xf] %vm1133, %v1106
  %1140 = vst.msk [vmem:[%s4 + $0x18] sm:$0xf] %vm1133, %v1107
  %1141 = vst.msk [vmem:[%s4 + $0x1c] sm:$0xf] %vm1133, %v1108
  %1142 = vst.msk [vmem:[%s4 + $0x20] sm:$0xf] %vm1133, %v1109
  %1143 = vst.msk [vmem:[%s4 + $0x24] sm:$0xf] %vm1133, %v1110
  %1144 = vst.msk [vmem:[%s4 + $0x28] sm:$0xf] %vm1133, %v1111
  %1145 = vst.msk [vmem:[%s4 + $0x2c] sm:$0xf] %vm1133, %v1112
  %1146 = vst.msk [vmem:[%s4 + $0x30] sm:$0xf] %vm1133, %v1113
  %1147 = vst.msk [vmem:[%s4 + $0x34] sm:$0xf] %vm1133, %v1114
  %1148 = vst.msk [vmem:[%s4 + $0x38] sm:$0xf] %vm1133, %v1115
  %1149 = vst.msk [vmem:[%s4 + $0x3c] sm:$0xf] %vm1133, %v1116
  // Predicated region
  $region18: #{st_conv_block.3} parent=0 // pred_check
    _
  $region19: #{st_conv_block.3} parent=0 // pred_check_branch
    %1151 = sbr.rel (0) target = $region21
  $region20: #{st_conv_block.3} parent=0 // pred_region
    _
  $region21: #{st_conv_block.3} parent=0 // pred_fallthru
    _
  // Predicated region
  $region22: #{st_conv_block.3} parent=0 // pred_check
    _
  $region23: #{st_conv_block.3} parent=0 // pred_check_branch
    %1153 = sbr.rel (0) target = $region25
  $region24: #{st_conv_block.3} parent=0 // pred_region
    _
  $region25: #{st_conv_block.3} parent=0 // pred_fallthru
    _

// kernel: st_conv_block.5
$region0: #{st_conv_block.5}
  #allocation0 [shape = 'u32[]', space=smem, size = 0x4, offset = 0x4, fixed_abs, tag = 'smem constant byte address 0x4 - core index']
  #allocation1 [shape = 'u32[144,128]{1,0:T(1,128)}', space=vmem, size = 0x12000, scoped, tag = 'internal scratch']
  %s0 = inlined_call_operand.vmem [shape: bf16[128,32], index: 0, kind: input, shape index: {}]
  %s1 = inlined_call_operand.vmem [shape: bf16[96,64], index: 1, kind: input, shape index: {}]
  %s2 = inlined_call_operand.vmem [shape: f32[1,64], index: 2, kind: input, shape index: {}]
  %s3 = inlined_call_operand.vmem [shape: f32[1,32], index: 3, kind: input, shape index: {}]
  %s4 = inlined_call_operand.vmem [shape: f32[1,32], index: 4, kind: input, shape index: {}]
  %s5 = inlined_call_operand.vmem [shape: f32[128,128], index: 5, kind: output, shape index: {}]
  %s6 = sld [smem:[#allocation0]]
  $region30: #{st_conv_block.5} parent=0
    _
  %s8 = ssub.s32 1, %s6
  %s9 = scalar_select 0, %s8, %s6
  // Predicated region
  $region2: #{st_conv_block.5} parent=0 // pred_check
    _
  $region3: #{st_conv_block.5} parent=0 // pred_check_branch
    %11 = sbr.rel (0) target = $region5
  $region4: #{st_conv_block.5} parent=0 // pred_region
    _
  $region5: #{st_conv_block.5} parent=0 // pred_fallthru
    _
  // Predicated region
  $region6: #{st_conv_block.5} parent=0 // pred_check
    _
  $region7: #{st_conv_block.5} parent=0 // pred_check_branch
    %13 = sbr.rel (0) target = $region9
  $region8: #{st_conv_block.5} parent=0 // pred_region
    _
  $region9: #{st_conv_block.5} parent=0 // pred_fallthru
    _
  // Predicated region
  $region10: #{st_conv_block.5} parent=0 // pred_check
    _
  $region11: #{st_conv_block.5} parent=0 // pred_check_branch
    %15 = sbr.rel (0) target = $region13
  $region12: #{st_conv_block.5} parent=0 // pred_region
    _
  $region13: #{st_conv_block.5} parent=0 // pred_fallthru
    _
  // Predicated region
  $region14: #{st_conv_block.5} parent=0 // pred_check
    _
  $region15: #{st_conv_block.5} parent=0 // pred_check_branch
    %17 = sbr.rel (0) target = $region17
  $region16: #{st_conv_block.5} parent=0 // pred_region
    _
  $region17: #{st_conv_block.5} parent=0 // pred_fallthru
    _
  // Predicated region
  $region18: #{st_conv_block.5} parent=0 // pred_check
    _
  $region19: #{st_conv_block.5} parent=0 // pred_check_branch
    %19 = sbr.rel (0) target = $region21
  $region20: #{st_conv_block.5} parent=0 // pred_region
    _
  $region21: #{st_conv_block.5} parent=0 // pred_fallthru
    _
  %v21 = vld [vmem:[%s0] sm:$0xf]
  %v22 = vld [vmem:[%s0 + $0x4] sm:$0xf]
  %v23 = vld [vmem:[%s0 + $0x8] sm:$0xf]
  %v24 = vld [vmem:[%s0 + $0xc] sm:$0xf]
  %v25 = vld [vmem:[%s0 + $0x10] sm:$0xf]
  %v26 = vld [vmem:[%s0 + $0x14] sm:$0xf]
  %v27 = vld [vmem:[%s0 + $0x18] sm:$0xf]
  %v28 = vld [vmem:[%s0 + $0x1c] sm:$0xf]
  %v29 = vld [vmem:[%s0 + $0x20] sm:$0xf]
  %v30 = vld [vmem:[%s0 + $0x24] sm:$0xf]
  %v31 = vld [vmem:[%s0 + $0x28] sm:$0xf]
  %v32 = vld [vmem:[%s0 + $0x2c] sm:$0xf]
  %v33 = vld [vmem:[%s0 + $0x30] sm:$0xf]
  %v34 = vld [vmem:[%s0 + $0x34] sm:$0xf]
  %v35 = vld [vmem:[%s0 + $0x38] sm:$0xf]
  %v36 = vld [vmem:[%s0 + $0x3c] sm:$0xf]
  %v37 = vunpack.c.l.bf16 %v21
  %v38 = vunpack.c.l.bf16 %v22
  %v39 = vunpack.c.l.bf16 %v23
  %v40 = vunpack.c.l.bf16 %v24
  %v41 = vunpack.c.l.bf16 %v25
  %v42 = vunpack.c.l.bf16 %v26
  %v43 = vunpack.c.l.bf16 %v27
  %v44 = vunpack.c.l.bf16 %v28
  %v45 = vunpack.c.l.bf16 %v29
  %v46 = vunpack.c.l.bf16 %v30
  %v47 = vunpack.c.l.bf16 %v31
  %v48 = vunpack.c.l.bf16 %v32
  %v49 = vunpack.c.l.bf16 %v33
  %v50 = vunpack.c.l.bf16 %v34
  %v51 = vunpack.c.l.bf16 %v35
  %v52 = vunpack.c.l.bf16 %v36
  %v53 = vlaneseq
  %v54 = vshrl.u32 %v53, 7
  %v55 = vadd.s32 %v54, 8
  %v56 = vadd.s32 %v54, 16
  %v57 = vadd.s32 %v54, 24
  %v58 = vadd.s32 %v54, 32
  %v59 = vadd.s32 %v54, 40
  %v60 = vadd.s32 %v54, 48
  %v61 = vadd.s32 %v54, 56
  %v62 = vadd.s32 %v54, 64
  %v63 = vadd.s32 %v54, 72
  %v64 = vadd.s32 %v54, 80
  %v65 = vadd.s32 %v54, 88
  %v66 = vadd.s32 %v54, 96
  %v67 = vadd.s32 %v54, 104
  %v68 = vadd.s32 %v54, 112
  %v69 = vadd.s32 %v54, 120
  %vm70 = vcmp.lt.s32.totalorder %v54, 0
  %v71 = vsub.s32 0, %v54
  %v72 = vsel %vm70, %v71, %v54
  %v73 = vshrl.u32 %v72, 3
  %v74 = vand.u32 %v72, 7
  %v75 = vsub.s32 0, %v74
  %v76 = vsel %vm70, %v75, %v74
  %vm77 = vcmp.lt.s32.totalorder %v55, 0
  %v78 = vsub.s32 0, %v55
  %v79 = vsel %vm77, %v78, %v55
  %v80 = vshrl.u32 %v79, 3
  %v81 = vand.u32 %v79, 7
  %v82 = vsub.s32 0, %v81
  %v83 = vsel %vm77, %v82, %v81
  %vm84 = vcmp.lt.s32.totalorder %v56, 0
  %v85 = vsub.s32 0, %v56
  %v86 = vsel %vm84, %v85, %v56
  %v87 = vshrl.u32 %v86, 3
  %v88 = vand.u32 %v86, 7
  %v89 = vsub.s32 0, %v88
  %v90 = vsel %vm84, %v89, %v88
  %vm91 = vcmp.lt.s32.totalorder %v57, 0
  %v92 = vsub.s32 0, %v57
  %v93 = vsel %vm91, %v92, %v57
  %v94 = vshrl.u32 %v93, 3
  %v95 = vand.u32 %v93, 7
  %v96 = vsub.s32 0, %v95
  %v97 = vsel %vm91, %v96, %v95
  %vm98 = vcmp.lt.s32.totalorder %v58, 0
  %v99 = vsub.s32 0, %v58
  %v100 = vsel %vm98, %v99, %v58
  %v101 = vshrl.u32 %v100, 3
  %v102 = vand.u32 %v100, 7
  %v103 = vsub.s32 0, %v102
  %v104 = vsel %vm98, %v103, %v102
  %vm105 = vcmp.lt.s32.totalorder %v59, 0
  %v106 = vsub.s32 0, %v59
  %v107 = vsel %vm105, %v106, %v59
  %v108 = vshrl.u32 %v107, 3
  %v109 = vand.u32 %v107, 7
  %v110 = vsub.s32 0, %v109
  %v111 = vsel %vm105, %v110, %v109
  %vm112 = vcmp.lt.s32.totalorder %v60, 0
  %v113 = vsub.s32 0, %v60
  %v114 = vsel %vm112, %v113, %v60
  %v115 = vshrl.u32 %v114, 3
  %v116 = vand.u32 %v114, 7
  %v117 = vsub.s32 0, %v116
  %v118 = vsel %vm112, %v117, %v116
  %vm119 = vcmp.lt.s32.totalorder %v61, 0
  %v120 = vsub.s32 0, %v61
  %v121 = vsel %vm119, %v120, %v61
  %v122 = vshrl.u32 %v121, 3
  %v123 = vand.u32 %v121, 7
  %v124 = vsub.s32 0, %v123
  %v125 = vsel %vm119, %v124, %v123
  %vm126 = vcmp.lt.s32.totalorder %v62, 0
  %v127 = vsub.s32 0, %v62
  %v128 = vsel %vm126, %v127, %v62
  %v129 = vshrl.u32 %v128, 3
  %v130 = vand.u32 %v128, 7
  %v131 = vsub.s32 0, %v130
  %v132 = vsel %vm126, %v131, %v130
  %vm133 = vcmp.lt.s32.totalorder %v63, 0
  %v134 = vsub.s32 0, %v63
  %v135 = vsel %vm133, %v134, %v63
  %v136 = vshrl.u32 %v135, 3
  %v137 = vand.u32 %v135, 7
  %v138 = vsub.s32 0, %v137
  %v139 = vsel %vm133, %v138, %v137
  %vm140 = vcmp.lt.s32.totalorder %v64, 0
  %v141 = vsub.s32 0, %v64
  %v142 = vsel %vm140, %v141, %v64
  %v143 = vshrl.u32 %v142, 3
  %v144 = vand.u32 %v142, 7
  %v145 = vsub.s32 0, %v144
  %v146 = vsel %vm140, %v145, %v144
  %vm147 = vcmp.lt.s32.totalorder %v65, 0
  %v148 = vsub.s32 0, %v65
  %v149 = vsel %vm147, %v148, %v65
  %v150 = vshrl.u32 %v149, 3
  %v151 = vand.u32 %v149, 7
  %v152 = vsub.s32 0, %v151
  %v153 = vsel %vm147, %v152, %v151
  %vm154 = vcmp.lt.s32.totalorder %v66, 0
  %v155 = vsub.s32 0, %v66
  %v156 = vsel %vm154, %v155, %v66
  %v157 = vshrl.u32 %v156, 3
  %v158 = vand.u32 %v156, 7
  %v159 = vsub.s32 0, %v158
  %v160 = vsel %vm154, %v159, %v158
  %vm161 = vcmp.lt.s32.totalorder %v67, 0
  %v162 = vsub.s32 0, %v67
  %v163 = vsel %vm161, %v162, %v67
  %v164 = vshrl.u32 %v163, 3
  %v165 = vand.u32 %v163, 7
  %v166 = vsub.s32 0, %v165
  %v167 = vsel %vm161, %v166, %v165
  %vm168 = vcmp.lt.s32.totalorder %v68, 0
  %v169 = vsub.s32 0, %v68
  %v170 = vsel %vm168, %v169, %v68
  %v171 = vshrl.u32 %v170, 3
  %v172 = vand.u32 %v170, 7
  %v173 = vsub.s32 0, %v172
  %v174 = vsel %vm168, %v173, %v172
  %vm175 = vcmp.lt.s32.totalorder %v69, 0
  %v176 = vsub.s32 0, %v69
  %v177 = vsel %vm175, %v176, %v69
  %v178 = vshrl.u32 %v177, 3
  %v179 = vand.u32 %v177, 7
  %v180 = vsub.s32 0, %v179
  %v181 = vsel %vm175, %v180, %v179
  %vm182 = vcmp.ne.s32.totalorder %v76, 0
  %vm183 = vcmp.ne.s32.totalorder %v83, 0
  %vm184 = vcmp.ne.s32.totalorder %v90, 0
  %vm185 = vcmp.ne.s32.totalorder %v97, 0
  %vm186 = vcmp.ne.s32.totalorder %v104, 0
  %vm187 = vcmp.ne.s32.totalorder %v111, 0
  %vm188 = vcmp.ne.s32.totalorder %v118, 0
  %vm189 = vcmp.ne.s32.totalorder %v125, 0
  %vm190 = vcmp.ne.s32.totalorder %v132, 0
  %vm191 = vcmp.ne.s32.totalorder %v139, 0
  %vm192 = vcmp.ne.s32.totalorder %v146, 0
  %vm193 = vcmp.ne.s32.totalorder %v153, 0
  %vm194 = vcmp.ne.s32.totalorder %v160, 0
  %vm195 = vcmp.ne.s32.totalorder %v167, 0
  %vm196 = vcmp.ne.s32.totalorder %v174, 0
  %vm197 = vcmp.ne.s32.totalorder %v181, 0
  %vm198 = vcmp.lt.s32.totalorder %v76, 0
  %vm199 = vcmp.lt.s32.totalorder %v83, 0
  %vm200 = vcmp.lt.s32.totalorder %v90, 0
  %vm201 = vcmp.lt.s32.totalorder %v97, 0
  %vm202 = vcmp.lt.s32.totalorder %v104, 0
  %vm203 = vcmp.lt.s32.totalorder %v111, 0
  %vm204 = vcmp.lt.s32.totalorder %v118, 0
  %vm205 = vcmp.lt.s32.totalorder %v125, 0
  %vm206 = vcmp.lt.s32.totalorder %v132, 0
  %vm207 = vcmp.lt.s32.totalorder %v139, 0
  %vm208 = vcmp.lt.s32.totalorder %v146, 0
  %vm209 = vcmp.lt.s32.totalorder %v153, 0
  %vm210 = vcmp.lt.s32.totalorder %v160, 0
  %vm211 = vcmp.lt.s32.totalorder %v167, 0
  %vm212 = vcmp.lt.s32.totalorder %v174, 0
  %vm213 = vcmp.lt.s32.totalorder %v181, 0
  %vm214 = vmand %vm198, %vm182
  %vm215 = vmand %vm199, %vm183
  %vm216 = vmand %vm200, %vm184
  %vm217 = vmand %vm201, %vm185
  %vm218 = vmand %vm202, %vm186
  %vm219 = vmand %vm203, %vm187
  %vm220 = vmand %vm204, %vm188
  %vm221 = vmand %vm205, %vm189
  %vm222 = vmand %vm206, %vm190
  %vm223 = vmand %vm207, %vm191
  %vm224 = vmand %vm208, %vm192
  %vm225 = vmand %vm209, %vm193
  %vm226 = vmand %vm210, %vm194
  %vm227 = vmand %vm211, %vm195
  %vm228 = vmand %vm212, %vm196
  %vm229 = vmand %vm213, %vm197
  %v230 = vadd.s32 %v76, 8
  %v231 = vadd.s32 %v83, 8
  %v232 = vadd.s32 %v90, 8
  %v233 = vadd.s32 %v97, 8
  %v234 = vadd.s32 %v104, 8
  %v235 = vadd.s32 %v111, 8
  %v236 = vadd.s32 %v118, 8
  %v237 = vadd.s32 %v125, 8
  %v238 = vadd.s32 %v132, 8
  %v239 = vadd.s32 %v139, 8
  %v240 = vadd.s32 %v146, 8
  %v241 = vadd.s32 %v153, 8
  %v242 = vadd.s32 %v160, 8
  %v243 = vadd.s32 %v167, 8
  %v244 = vadd.s32 %v174, 8
  %v245 = vadd.s32 %v181, 8
  %v246 = vsel %vm214, %v230, %v76
  %v247 = vsel %vm215, %v231, %v83
  %v248 = vsel %vm216, %v232, %v90
  %v249 = vsel %vm217, %v233, %v97
  %v250 = vsel %vm218, %v234, %v104
  %v251 = vsel %vm219, %v235, %v111
  %v252 = vsel %vm220, %v236, %v118
  %v253 = vsel %vm221, %v237, %v125
  %v254 = vsel %vm222, %v238, %v132
  %v255 = vsel %vm223, %v239, %v139
  %v256 = vsel %vm224, %v240, %v146
  %v257 = vsel %vm225, %v241, %v153
  %v258 = vsel %vm226, %v242, %v160
  %v259 = vsel %vm227, %v243, %v167
  %v260 = vsel %vm228, %v244, %v174
  %v261 = vsel %vm229, %v245, %v181
  %vm262 = vcmp.gt.s32.totalorder %v246, 0
  %vm263 = vcmp.gt.s32.totalorder %v247, 0
  %vm264 = vcmp.gt.s32.totalorder %v248, 0
  %vm265 = vcmp.gt.s32.totalorder %v249, 0
  %vm266 = vcmp.gt.s32.totalorder %v250, 0
  %vm267 = vcmp.gt.s32.totalorder %v251, 0
  %vm268 = vcmp.gt.s32.totalorder %v252, 0
  %vm269 = vcmp.gt.s32.totalorder %v253, 0
  %vm270 = vcmp.gt.s32.totalorder %v254, 0
  %vm271 = vcmp.gt.s32.totalorder %v255, 0
  %vm272 = vcmp.gt.s32.totalorder %v256, 0
  %vm273 = vcmp.gt.s32.totalorder %v257, 0
  %vm274 = vcmp.gt.s32.totalorder %v258, 0
  %vm275 = vcmp.gt.s32.totalorder %v259, 0
  %vm276 = vcmp.gt.s32.totalorder %v260, 0
  %vm277 = vcmp.gt.s32.totalorder %v261, 0
  %v278 = vrot.slane %v37, 7
  %v279 = vrot.slane %v38, 7
  %v280 = vrot.slane %v39, 7
  %v281 = vrot.slane %v40, 7
  %v282 = vrot.slane %v41, 7
  %v283 = vrot.slane %v42, 7
  %v284 = vrot.slane %v43, 7
  %v285 = vrot.slane %v44, 7
  %v286 = vrot.slane %v45, 7
  %v287 = vrot.slane %v46, 7
  %v288 = vrot.slane %v47, 7
  %v289 = vrot.slane %v48, 7
  %v290 = vrot.slane %v49, 7
  %v291 = vrot.slane %v50, 7
  %v292 = vrot.slane %v51, 7
  %v293 = vrot.slane %v52, 7
  %vm294 = vcmp.lt.s32.totalorder %v54, 1
  %v295 = vsel %vm294, %v292, %v293
  %v296 = vsel %vm294, %v291, %v292
  %v297 = vsel %vm294, %v290, %v291
  %v298 = vsel %vm294, %v289, %v290
  %v299 = vsel %vm294, %v288, %v289
  %v300 = vsel %vm294, %v287, %v288
  %v301 = vsel %vm294, %v286, %v287
  %v302 = vsel %vm294, %v285, %v286
  %v303 = vsel %vm294, %v284, %v285
  %v304 = vsel %vm294, %v283, %v284
  %v305 = vsel %vm294, %v282, %v283
  %v306 = vsel %vm294, %v281, %v282
  %v307 = vsel %vm294, %v280, %v281
  %v308 = vsel %vm294, %v279, %v280
  %v309 = vsel %vm294, %v278, %v279
  %v310 = vsel %vm294, %v293, %v278
  %v311 = vsel %vm262, 1, 0
  %v312 = vsel %vm263, 1, 0
  %v313 = vsel %vm264, 1, 0
  %v314 = vsel %vm265, 1, 0
  %v315 = vsel %vm266, 1, 0
  %v316 = vsel %vm267, 1, 0
  %v317 = vsel %vm268, 1, 0
  %v318 = vsel %vm269, 1, 0
  %v319 = vsel %vm270, 1, 0
  %v320 = vsel %vm271, 1, 0
  %v321 = vsel %vm272, 1, 0
  %v322 = vsel %vm273, 1, 0
  %v323 = vsel %vm274, 1, 0
  %v324 = vsel %vm275, 1, 0
  %v325 = vsel %vm276, 1, 0
  %v326 = vsel %vm277, 1, 0
  %vm327 = vcmp.eq.s32.totalorder %v311, 1
  %vm328 = vcmp.eq.s32.totalorder %v312, 1
  %vm329 = vcmp.eq.s32.totalorder %v313, 1
  %vm330 = vcmp.eq.s32.totalorder %v314, 1
  %vm331 = vcmp.eq.s32.totalorder %v315, 1
  %vm332 = vcmp.eq.s32.totalorder %v316, 1
  %vm333 = vcmp.eq.s32.totalorder %v317, 1
  %vm334 = vcmp.eq.s32.totalorder %v318, 1
  %vm335 = vcmp.eq.s32.totalorder %v319, 1
  %vm336 = vcmp.eq.s32.totalorder %v320, 1
  %vm337 = vcmp.eq.s32.totalorder %v321, 1
  %vm338 = vcmp.eq.s32.totalorder %v322, 1
  %vm339 = vcmp.eq.s32.totalorder %v323, 1
  %vm340 = vcmp.eq.s32.totalorder %v324, 1
  %vm341 = vcmp.eq.s32.totalorder %v325, 1
  %vm342 = vcmp.eq.s32.totalorder %v326, 1
  %v343 = vsel %vm327, %v310, 0.0
  %v344 = vsel %vm328, %v309, 0.0
  %v345 = vsel %vm329, %v308, 0.0
  %v346 = vsel %vm330, %v307, 0.0
  %v347 = vsel %vm331, %v306, 0.0
  %v348 = vsel %vm332, %v305, 0.0
  %v349 = vsel %vm333, %v304, 0.0
  %v350 = vsel %vm334, %v303, 0.0
  %v351 = vsel %vm335, %v302, 0.0
  %v352 = vsel %vm336, %v301, 0.0
  %v353 = vsel %vm337, %v300, 0.0
  %v354 = vsel %vm338, %v299, 0.0
  %v355 = vsel %vm339, %v298, 0.0
  %v356 = vsel %vm340, %v297, 0.0
  %v357 = vsel %vm341, %v296, 0.0
  %v358 = vsel %vm342, %v295, 0.0
  %vm359 = vcmp.lt.s32.totalorder %v246, 7
  %vm360 = vcmp.lt.s32.totalorder %v247, 7
  %vm361 = vcmp.lt.s32.totalorder %v248, 7
  %vm362 = vcmp.lt.s32.totalorder %v249, 7
  %vm363 = vcmp.lt.s32.totalorder %v250, 7
  %vm364 = vcmp.lt.s32.totalorder %v251, 7
  %vm365 = vcmp.lt.s32.totalorder %v252, 7
  %vm366 = vcmp.lt.s32.totalorder %v253, 7
  %vm367 = vcmp.lt.s32.totalorder %v254, 7
  %vm368 = vcmp.lt.s32.totalorder %v255, 7
  %vm369 = vcmp.lt.s32.totalorder %v256, 7
  %vm370 = vcmp.lt.s32.totalorder %v257, 7
  %vm371 = vcmp.lt.s32.totalorder %v258, 7
  %vm372 = vcmp.lt.s32.totalorder %v259, 7
  %vm373 = vcmp.lt.s32.totalorder %v260, 7
  %vm374 = vcmp.lt.s32.totalorder %v261, 7
  %v375 = vrot.slane %v37, 1
  %v376 = vrot.slane %v38, 1
  %v377 = vrot.slane %v39, 1
  %v378 = vrot.slane %v40, 1
  %v379 = vrot.slane %v41, 1
  %v380 = vrot.slane %v42, 1
  %v381 = vrot.slane %v43, 1
  %v382 = vrot.slane %v44, 1
  %v383 = vrot.slane %v45, 1
  %v384 = vrot.slane %v46, 1
  %v385 = vrot.slane %v47, 1
  %v386 = vrot.slane %v48, 1
  %v387 = vrot.slane %v49, 1
  %v388 = vrot.slane %v50, 1
  %v389 = vrot.slane %v51, 1
  %v390 = vrot.slane %v52, 1
  %vm391 = vcmp.lt.s32.totalorder %v54, 7
  %v392 = vsel %vm391, %v389, %v390
  %v393 = vsel %vm391, %v388, %v389
  %v394 = vsel %vm391, %v387, %v388
  %v395 = vsel %vm391, %v386, %v387
  %v396 = vsel %vm391, %v385, %v386
  %v397 = vsel %vm391, %v384, %v385
  %v398 = vsel %vm391, %v383, %v384
  %v399 = vsel %vm391, %v382, %v383
  %v400 = vsel %vm391, %v381, %v382
  %v401 = vsel %vm391, %v380, %v381
  %v402 = vsel %vm391, %v379, %v380
  %v403 = vsel %vm391, %v378, %v379
  %v404 = vsel %vm391, %v377, %v378
  %v405 = vsel %vm391, %v376, %v377
  %v406 = vsel %vm391, %v375, %v376
  %v407 = vsel %vm391, %v390, %v375
  %v408 = vsel %vm359, 1, 0
  %v409 = vsel %vm360, 1, 0
  %v410 = vsel %vm361, 1, 0
  %v411 = vsel %vm362, 1, 0
  %v412 = vsel %vm363, 1, 0
  %v413 = vsel %vm364, 1, 0
  %v414 = vsel %vm365, 1, 0
  %v415 = vsel %vm366, 1, 0
  %v416 = vsel %vm367, 1, 0
  %v417 = vsel %vm368, 1, 0
  %v418 = vsel %vm369, 1, 0
  %v419 = vsel %vm370, 1, 0
  %v420 = vsel %vm371, 1, 0
  %v421 = vsel %vm372, 1, 0
  %v422 = vsel %vm373, 1, 0
  %v423 = vsel %vm374, 1, 0
  %vm424 = vcmp.eq.s32.totalorder %v408, 1
  %vm425 = vcmp.eq.s32.totalorder %v409, 1
  %vm426 = vcmp.eq.s32.totalorder %v410, 1
  %vm427 = vcmp.eq.s32.totalorder %v411, 1
  %vm428 = vcmp.eq.s32.totalorder %v412, 1
  %vm429 = vcmp.eq.s32.totalorder %v413, 1
  %vm430 = vcmp.eq.s32.totalorder %v414, 1
  %vm431 = vcmp.eq.s32.totalorder %v415, 1
  %vm432 = vcmp.eq.s32.totalorder %v416, 1
  %vm433 = vcmp.eq.s32.totalorder %v417, 1
  %vm434 = vcmp.eq.s32.totalorder %v418, 1
  %vm435 = vcmp.eq.s32.totalorder %v419, 1
  %vm436 = vcmp.eq.s32.totalorder %v420, 1
  %vm437 = vcmp.eq.s32.totalorder %v421, 1
  %vm438 = vcmp.eq.s32.totalorder %v422, 1
  %vm439 = vcmp.eq.s32.totalorder %v423, 1
  %v440 = vsel %vm424, %v406, 0.0
  %v441 = vsel %vm425, %v405, 0.0
  %v442 = vsel %vm426, %v404, 0.0
  %v443 = vsel %vm427, %v403, 0.0
  %v444 = vsel %vm428, %v402, 0.0
  %v445 = vsel %vm429, %v401, 0.0
  %v446 = vsel %vm430, %v400, 0.0
  %v447 = vsel %vm431, %v399, 0.0
  %v448 = vsel %vm432, %v398, 0.0
  %v449 = vsel %vm433, %v397, 0.0
  %v450 = vsel %vm434, %v396, 0.0
  %v451 = vsel %vm435, %v395, 0.0
  %v452 = vsel %vm436, %v394, 0.0
  %v453 = vsel %vm437, %v393, 0.0
  %v454 = vsel %vm438, %v392, 0.0
  %v455 = vsel %vm439, %v407, 0.0
  %472 = vrot.lane.b32.xlu0 %v37, 32
  %v473 = vpop.permute.xlu0 %472
  %474 = vrot.lane.b32.xlu0 %v38, 32
  %v475 = vpop.permute.xlu0 %474
  %476 = vrot.lane.b32.xlu0 %v39, 32
  %v477 = vpop.permute.xlu0 %476
  %478 = vrot.lane.b32.xlu0 %v40, 32
  %v479 = vpop.permute.xlu0 %478
  %480 = vrot.lane.b32.xlu0 %v41, 32
  %v481 = vpop.permute.xlu0 %480
  %482 = vrot.lane.b32.xlu0 %v42, 32
  %v483 = vpop.permute.xlu0 %482
  %484 = vrot.lane.b32.xlu0 %v43, 32
  %v485 = vpop.permute.xlu0 %484
  %486 = vrot.lane.b32.xlu0 %v44, 32
  %v487 = vpop.permute.xlu0 %486
  %488 = vrot.lane.b32.xlu0 %v45, 32
  %v489 = vpop.permute.xlu0 %488
  %490 = vrot.lane.b32.xlu0 %v46, 32
  %v491 = vpop.permute.xlu0 %490
  %492 = vrot.lane.b32.xlu0 %v47, 32
  %v493 = vpop.permute.xlu0 %492
  %494 = vrot.lane.b32.xlu0 %v48, 32
  %v495 = vpop.permute.xlu0 %494
  %496 = vrot.lane.b32.xlu0 %v49, 32
  %v497 = vpop.permute.xlu0 %496
  %498 = vrot.lane.b32.xlu0 %v50, 32
  %v499 = vpop.permute.xlu0 %498
  %500 = vrot.lane.b32.xlu0 %v51, 32
  %v501 = vpop.permute.xlu0 %500
  %502 = vrot.lane.b32.xlu0 %v52, 32
  %v503 = vpop.permute.xlu0 %502
  %536 = vrot.lane.b32.xlu0 %v440, 64
  %v537 = vpop.permute.xlu0 %536
  %538 = vrot.lane.b32.xlu0 %v441, 64
  %v539 = vpop.permute.xlu0 %538
  %540 = vrot.lane.b32.xlu0 %v442, 64
  %v541 = vpop.permute.xlu0 %540
  %542 = vrot.lane.b32.xlu0 %v443, 64
  %v543 = vpop.permute.xlu0 %542
  %544 = vrot.lane.b32.xlu0 %v444, 64
  %v545 = vpop.permute.xlu0 %544
  %546 = vrot.lane.b32.xlu0 %v445, 64
  %v547 = vpop.permute.xlu0 %546
  %548 = vrot.lane.b32.xlu0 %v446, 64
  %v549 = vpop.permute.xlu0 %548
  %550 = vrot.lane.b32.xlu0 %v447, 64
  %v551 = vpop.permute.xlu0 %550
  %552 = vrot.lane.b32.xlu0 %v448, 64
  %v553 = vpop.permute.xlu0 %552
  %554 = vrot.lane.b32.xlu0 %v449, 64
  %v555 = vpop.permute.xlu0 %554
  %556 = vrot.lane.b32.xlu0 %v450, 64
  %v557 = vpop.permute.xlu0 %556
  %558 = vrot.lane.b32.xlu0 %v451, 64
  %v559 = vpop.permute.xlu0 %558
  %560 = vrot.lane.b32.xlu0 %v452, 64
  %v561 = vpop.permute.xlu0 %560
  %562 = vrot.lane.b32.xlu0 %v453, 64
  %v563 = vpop.permute.xlu0 %562
  %564 = vrot.lane.b32.xlu0 %v454, 64
  %v565 = vpop.permute.xlu0 %564
  %566 = vrot.lane.b32.xlu0 %v455, 64
  %v567 = vpop.permute.xlu0 %566
  %vm584 = vcmask 261120
  %v585 = vsel %vm584, %v343, %v473
  %v586 = vsel %vm584, %v344, %v475
  %v587 = vsel %vm584, %v345, %v477
  %v588 = vsel %vm584, %v346, %v479
  %v589 = vsel %vm584, %v347, %v481
  %v590 = vsel %vm584, %v348, %v483
  %v591 = vsel %vm584, %v349, %v485
  %v592 = vsel %vm584, %v350, %v487
  %v593 = vsel %vm584, %v351, %v489
  %v594 = vsel %vm584, %v352, %v491
  %v595 = vsel %vm584, %v353, %v493
  %v596 = vsel %vm584, %v354, %v495
  %v597 = vsel %vm584, %v355, %v497
  %v598 = vsel %vm584, %v356, %v499
  %v599 = vsel %vm584, %v357, %v501
  %v600 = vsel %vm584, %v358, %v503
  %vm601 = vcmask 523264
  %v602 = vsel %vm601, %v585, %v537
  %v603 = vsel %vm601, %v586, %v539
  %v604 = vsel %vm601, %v587, %v541
  %v605 = vsel %vm601, %v588, %v543
  %v606 = vsel %vm601, %v589, %v545
  %v607 = vsel %vm601, %v590, %v547
  %v608 = vsel %vm601, %v591, %v549
  %v609 = vsel %vm601, %v592, %v551
  %v610 = vsel %vm601, %v593, %v553
  %v611 = vsel %vm601, %v594, %v555
  %v612 = vsel %vm601, %v595, %v557
  %v613 = vsel %vm601, %v596, %v559
  %v614 = vsel %vm601, %v597, %v561
  %v615 = vsel %vm601, %v598, %v563
  %v616 = vsel %vm601, %v599, %v565
  %v617 = vsel %vm601, %v600, %v567
  %v618 = vpack.c.bf16 %v603, %v602
  %v619 = vpack.c.bf16 %v605, %v604
  %v620 = vpack.c.bf16 %v607, %v606
  %v621 = vpack.c.bf16 %v609, %v608
  %v622 = vpack.c.bf16 %v611, %v610
  %v623 = vpack.c.bf16 %v613, %v612
  %v624 = vpack.c.bf16 %v615, %v614
  %v625 = vpack.c.bf16 %v617, %v616
  %v626 = vld [vmem:[%s1] sm:$0xf]
  %v627 = vld [vmem:[%s1 + $0x4] sm:$0xf]
  %v628 = vld [vmem:[%s1 + $0x8] sm:$0xf]
  %v629 = vld [vmem:[%s1 + $0xc] sm:$0xf]
  %v630 = vld [vmem:[%s1 + $0x10] sm:$0xf]
  %v631 = vld [vmem:[%s1 + $0x14] sm:$0xf]
  %v632 = vld [vmem:[%s1 + $0x18] sm:$0xf]
  %v633 = vld [vmem:[%s1 + $0x1c] sm:$0xf]
  %v634 = vld [vmem:[%s1 + $0x20] sm:$0xf]
  %v635 = vld [vmem:[%s1 + $0x24] sm:$0xf]
  %v636 = vld [vmem:[%s1 + $0x28] sm:$0xf]
  %v637 = vld [vmem:[%s1 + $0x2c] sm:$0xf]
  %v638 = vld [vmem:[%s2] sm:$0x1]
  %v640 = vlaneseq
  %v641 = vshrl.u32 %v640, 7
  %v642 = vsub.s32 0, %v641
  %v643 = vrot.slane %v638, %v642
  %v657 = vunpack.c.l.b16 %v626
  %v658 = vunpack.c.l.b16 %v627
  %v659 = vunpack.c.l.b16 %v628
  %v660 = vunpack.c.l.b16 %v629
  %v661 = vunpack.c.l.b16 %v630
  %v662 = vunpack.c.l.b16 %v631
  %v663 = vunpack.c.l.b16 %v632
  %v664 = vunpack.c.l.b16 %v633
  %v665 = vunpack.c.l.b16 %v634
  %v666 = vunpack.c.l.b16 %v635
  %v667 = vunpack.c.l.b16 %v636
  %v668 = vunpack.c.l.b16 %v637
  %v669 = vpack.c.b16 %v658, %v657
  %v670 = vpack.c.b16 %v660, %v659
  %v671 = vpack.c.b16 %v662, %v661
  %v672 = vpack.c.b16 %v664, %v663
  %v673 = vpack.c.b16 %v666, %v665
  %v674 = vpack.c.b16 %v668, %v667
  %vm681 = vcmask 785408
  %v683 = vsel %vm681, %v618, 0
  %v686 = vsel %vm681, %v619, 0
  %v689 = vsel %vm681, %v620, 0
  %v692 = vsel %vm681, %v621, 0
  %v695 = vsel %vm681, %v622, 0
  %v698 = vsel %vm681, %v623, 0
  %v701 = vsel %vm681, %v624, 0
  %v704 = vsel %vm681, %v625, 0
  %706 = vmatprep.subr.bf16.mxu0 0
  %707 = vmatpush1.bf16.msra.mxu0 %v669
  %708 = vmatprep.subr.bf16.mxu0 0
  %709 = vmatpush1.bf16.msra.mxu0 %v670
  %710 = vmatprep.subr.bf16.mxu0 0
  %711 = vmatpush1.bf16.msra.mxu0 %v671
  %712 = vmatprep.subr.bf16.mxu0 0
  %713 = vmatpush1.bf16.msra.mxu0 %v672
  %714 = vmatprep.subr.bf16.mxu0 0
  %715 = vmatpush1.bf16.msra.mxu0 %v673
  %716 = vmatprep.subr.bf16.mxu0 0
  %717 = vmatpush1.bf16.msra.mxu0 %v674
  %718 = vmatprep.subr.bf16.mxu0 0
  %719 = vmatpush1.bf16.msra.mxu0 0
  %720 = vmatprep.subr.bf16.mxu0 0
  %721 = vmatpush1.bf16.msra.mxu0 0
  %722 = vmatprep.subr.bf16.mxu0 0
  %723 = vmatpush1.bf16.msra.mxu0 0
  %724 = vmatprep.subr.bf16.mxu0 0
  %725 = vmatpush1.bf16.msra.mxu0 0
  %726 = vmatprep.subr.bf16.mxu0 0
  %727 = vmatpush1.bf16.msra.mxu0 0
  %728 = vmatprep.subr.bf16.mxu0 0
  %729 = vmatpush1.bf16.msra.mxu0 0
  %730 = vmatprep.subr.bf16.mxu0 0
  %731 = vmatpush1.bf16.msra.mxu0 0
  %732 = vmatprep.subr.bf16.mxu0 0
  %733 = vmatpush1.bf16.msra.mxu0 0
  %734 = vmatprep.subr.bf16.mxu0 0
  %735 = vmatpush1.bf16.msra.mxu0 0
  %736 = vmatprep.subr.bf16.mxu0 0
  %737 = vmatpush1.bf16.msra.mxu0 0
  %738 = vmatprep.mubr.bf16.mxu0 0
  %739 = vmatmul.mubr.bf16.gmra.mrb[0].mxu0 %v683
  %v740 = vpop.f32.mrb[0].mxu0
  %v741 = vadd.f32 %v643, %v740
  %v742 = vpop.f32.mrb[0].mxu0
  %v743 = vpop.f32.mrb[0].mxu0
  %v744 = vadd.f32 %v643, %v743
  %v745 = vpop.f32.mrb[0].mxu0
  %746 = vmatprep.mubr.bf16.mxu0 0
  %747 = vmatmul.mubr.bf16.gmra.mrb[0].mxu0 %v686
  %v748 = vpop.f32.mrb[0].mxu0
  %v749 = vadd.f32 %v643, %v748
  %v750 = vpop.f32.mrb[0].mxu0
  %v751 = vpop.f32.mrb[0].mxu0
  %v752 = vadd.f32 %v643, %v751
  %v753 = vpop.f32.mrb[0].mxu0
  %754 = vmatprep.mubr.bf16.mxu0 0
  %755 = vmatmul.mubr.bf16.gmra.mrb[0].mxu0 %v689
  %v756 = vpop.f32.mrb[0].mxu0
  %v757 = vadd.f32 %v643, %v756
  %v758 = vpop.f32.mrb[0].mxu0
  %v759 = vpop.f32.mrb[0].mxu0
  %v760 = vadd.f32 %v643, %v759
  %v761 = vpop.f32.mrb[0].mxu0
  %762 = vmatprep.mubr.bf16.mxu0 0
  %763 = vmatmul.mubr.bf16.gmra.mrb[0].mxu0 %v692
  %v764 = vpop.f32.mrb[0].mxu0
  %v765 = vadd.f32 %v643, %v764
  %v766 = vpop.f32.mrb[0].mxu0
  %v767 = vpop.f32.mrb[0].mxu0
  %v768 = vadd.f32 %v643, %v767
  %v769 = vpop.f32.mrb[0].mxu0
  %770 = vmatprep.mubr.bf16.mxu0 0
  %771 = vmatmul.mubr.bf16.gmra.mrb[0].mxu0 %v695
  %v772 = vpop.f32.mrb[0].mxu0
  %v773 = vadd.f32 %v643, %v772
  %v774 = vpop.f32.mrb[0].mxu0
  %v775 = vpop.f32.mrb[0].mxu0
  %v776 = vadd.f32 %v643, %v775
  %v777 = vpop.f32.mrb[0].mxu0
  %778 = vmatprep.mubr.bf16.mxu0 0
  %779 = vmatmul.mubr.bf16.gmra.mrb[0].mxu0 %v698
  %v780 = vpop.f32.mrb[0].mxu0
  %v781 = vadd.f32 %v643, %v780
  %v782 = vpop.f32.mrb[0].mxu0
  %v783 = vpop.f32.mrb[0].mxu0
  %v784 = vadd.f32 %v643, %v783
  %v785 = vpop.f32.mrb[0].mxu0
  %786 = vmatprep.mubr.bf16.mxu0 0
  %787 = vmatmul.mubr.bf16.gmra.mrb[0].mxu0 %v701
  %v788 = vpop.f32.mrb[0].mxu0
  %v789 = vadd.f32 %v643, %v788
  %v790 = vpop.f32.mrb[0].mxu0
  %v791 = vpop.f32.mrb[0].mxu0
  %v792 = vadd.f32 %v643, %v791
  %v793 = vpop.f32.mrb[0].mxu0
  %794 = vmatprep.mubr.bf16.mxu0 0
  %795 = vmatmul.mubr.bf16.gmra.mrb[0].mxu0 %v704
  %v796 = vpop.f32.mrb[0].mxu0
  %v797 = vadd.f32 %v643, %v796
  %v798 = vpop.f32.mrb[0].mxu0
  %v799 = vpop.f32.mrb[0].mxu0
  %v800 = vadd.f32 %v643, %v799
  %v801 = vpop.f32.mrb[0].mxu0
  %802 = vdwg.mxu0
  %v803 = vxor.u32 %v741, 2147483648
  %v804 = vxor.u32 %v744, 2147483648
  %v805 = vxor.u32 %v749, 2147483648
  %v806 = vxor.u32 %v752, 2147483648
  %v807 = vxor.u32 %v757, 2147483648
  %v808 = vxor.u32 %v760, 2147483648
  %v809 = vxor.u32 %v765, 2147483648
  %v810 = vxor.u32 %v768, 2147483648
  %v811 = vxor.u32 %v773, 2147483648
  %v812 = vxor.u32 %v776, 2147483648
  %v813 = vxor.u32 %v781, 2147483648
  %v814 = vxor.u32 %v784, 2147483648
  %v815 = vxor.u32 %v789, 2147483648
  %v816 = vxor.u32 %v792, 2147483648
  %v817 = vxor.u32 %v797, 2147483648
  %v818 = vxor.u32 %v800, 2147483648
  %v819 = vmul.f32 %v803, 1.442695
  %v820 = vpow.pop %v819
  %v821 = vmul.f32 %v804, 1.442695
  %v822 = vpow.pop %v821
  %v823 = vmul.f32 %v805, 1.442695
  %v824 = vpow.pop %v823
  %v825 = vmul.f32 %v806, 1.442695
  %v826 = vpow.pop %v825
  %v827 = vmul.f32 %v807, 1.442695
  %v828 = vpow.pop %v827
  %v829 = vmul.f32 %v808, 1.442695
  %v830 = vpow.pop %v829
  %v831 = vmul.f32 %v809, 1.442695
  %v832 = vpow.pop %v831
  %v833 = vmul.f32 %v810, 1.442695
  %v834 = vpow.pop %v833
  %v835 = vmul.f32 %v811, 1.442695
  %v836 = vpow.pop %v835
  %v837 = vmul.f32 %v812, 1.442695
  %v838 = vpow.pop %v837
  %v839 = vmul.f32 %v813, 1.442695
  %v840 = vpow.pop %v839
  %v841 = vmul.f32 %v814, 1.442695
  %v842 = vpow.pop %v841
  %v843 = vmul.f32 %v815, 1.442695
  %v844 = vpow.pop %v843
  %v845 = vmul.f32 %v816, 1.442695
  %v846 = vpow.pop %v845
  %v847 = vmul.f32 %v817, 1.442695
  %v848 = vpow.pop %v847
  %v849 = vmul.f32 %v818, 1.442695
  %v850 = vpow.pop %v849
  %v851 = vadd.f32 %v820, 1.0
  %v852 = vadd.f32 %v822, 1.0
  %v853 = vadd.f32 %v824, 1.0
  %v854 = vadd.f32 %v826, 1.0
  %v855 = vadd.f32 %v828, 1.0
  %v856 = vadd.f32 %v830, 1.0
  %v857 = vadd.f32 %v832, 1.0
  %v858 = vadd.f32 %v834, 1.0
  %v859 = vadd.f32 %v836, 1.0
  %v860 = vadd.f32 %v838, 1.0
  %v861 = vadd.f32 %v840, 1.0
  %v862 = vadd.f32 %v842, 1.0
  %v863 = vadd.f32 %v844, 1.0
  %v864 = vadd.f32 %v846, 1.0
  %v865 = vadd.f32 %v848, 1.0
  %v866 = vadd.f32 %v850, 1.0
  %v867 = vrcp.pop %v851
  %v868 = vmul.f32 1.0, %v867
  %v869 = vrcp.pop %v852
  %v870 = vmul.f32 1.0, %v869
  %v871 = vrcp.pop %v853
  %v872 = vmul.f32 1.0, %v871
  %v873 = vrcp.pop %v854
  %v874 = vmul.f32 1.0, %v873
  %v875 = vrcp.pop %v855
  %v876 = vmul.f32 1.0, %v875
  %v877 = vrcp.pop %v856
  %v878 = vmul.f32 1.0, %v877
  %v879 = vrcp.pop %v857
  %v880 = vmul.f32 1.0, %v879
  %v881 = vrcp.pop %v858
  %v882 = vmul.f32 1.0, %v881
  %v883 = vrcp.pop %v859
  %v884 = vmul.f32 1.0, %v883
  %v885 = vrcp.pop %v860
  %v886 = vmul.f32 1.0, %v885
  %v887 = vrcp.pop %v861
  %v888 = vmul.f32 1.0, %v887
  %v889 = vrcp.pop %v862
  %v890 = vmul.f32 1.0, %v889
  %v891 = vrcp.pop %v863
  %v892 = vmul.f32 1.0, %v891
  %v893 = vrcp.pop %v864
  %v894 = vmul.f32 1.0, %v893
  %v895 = vrcp.pop %v865
  %v896 = vmul.f32 1.0, %v895
  %v897 = vrcp.pop %v866
  %v898 = vmul.f32 1.0, %v897
  %915 = vrot.lane.b32.xlu0 %v868, 96
  %v916 = vpop.permute.xlu0 %915
  %917 = vrot.lane.b32.xlu0 %v870, 96
  %v918 = vpop.permute.xlu0 %917
  %919 = vrot.lane.b32.xlu0 %v872, 96
  %v920 = vpop.permute.xlu0 %919
  %921 = vrot.lane.b32.xlu0 %v874, 96
  %v922 = vpop.permute.xlu0 %921
  %923 = vrot.lane.b32.xlu0 %v876, 96
  %v924 = vpop.permute.xlu0 %923
  %925 = vrot.lane.b32.xlu0 %v878, 96
  %v926 = vpop.permute.xlu0 %925
  %927 = vrot.lane.b32.xlu0 %v880, 96
  %v928 = vpop.permute.xlu0 %927
  %929 = vrot.lane.b32.xlu0 %v882, 96
  %v930 = vpop.permute.xlu0 %929
  %931 = vrot.lane.b32.xlu0 %v884, 96
  %v932 = vpop.permute.xlu0 %931
  %933 = vrot.lane.b32.xlu0 %v886, 96
  %v934 = vpop.permute.xlu0 %933
  %935 = vrot.lane.b32.xlu0 %v888, 96
  %v936 = vpop.permute.xlu0 %935
  %937 = vrot.lane.b32.xlu0 %v890, 96
  %v938 = vpop.permute.xlu0 %937
  %939 = vrot.lane.b32.xlu0 %v892, 96
  %v940 = vpop.permute.xlu0 %939
  %941 = vrot.lane.b32.xlu0 %v894, 96
  %v942 = vpop.permute.xlu0 %941
  %943 = vrot.lane.b32.xlu0 %v896, 96
  %v944 = vpop.permute.xlu0 %943
  %945 = vrot.lane.b32.xlu0 %v898, 96
  %v946 = vpop.permute.xlu0 %945
  %v963 = vmul.f32 %v741, %v916
  %v964 = vmul.f32 %v744, %v918
  %v965 = vmul.f32 %v749, %v920
  %v966 = vmul.f32 %v752, %v922
  %v967 = vmul.f32 %v757, %v924
  %v968 = vmul.f32 %v760, %v926
  %v969 = vmul.f32 %v765, %v928
  %v970 = vmul.f32 %v768, %v930
  %v971 = vmul.f32 %v773, %v932
  %v972 = vmul.f32 %v776, %v934
  %v973 = vmul.f32 %v781, %v936
  %v974 = vmul.f32 %v784, %v938
  %v975 = vmul.f32 %v789, %v940
  %v976 = vmul.f32 %v792, %v942
  %v977 = vmul.f32 %v797, %v944
  %v978 = vmul.f32 %v800, %v946
  %v979 = vsel %vm584, %v963, 0.0
  %980 = vadd.xlane.f32.xlu0 %v979
  %v981 = vpop.xlane.xlu0 %980
  %v982 = vsel %vm584, %v964, 0.0
  %983 = vadd.xlane.f32.xlu0 %v982
  %v984 = vpop.xlane.xlu0 %983
  %v985 = vsel %vm584, %v965, 0.0
  %986 = vadd.xlane.f32.xlu0 %v985
  %v987 = vpop.xlane.xlu0 %986
  %v988 = vsel %vm584, %v966, 0.0
  %989 = vadd.xlane.f32.xlu0 %v988
  %v990 = vpop.xlane.xlu0 %989
  %v991 = vsel %vm584, %v967, 0.0
  %992 = vadd.xlane.f32.xlu0 %v991
  %v993 = vpop.xlane.xlu0 %992
  %v994 = vsel %vm584, %v968, 0.0
  %995 = vadd.xlane.f32.xlu0 %v994
  %v996 = vpop.xlane.xlu0 %995
  %v997 = vsel %vm584, %v969, 0.0
  %998 = vadd.xlane.f32.xlu0 %v997
  %v999 = vpop.xlane.xlu0 %998
  %v1000 = vsel %vm584, %v970, 0.0
  %1001 = vadd.xlane.f32.xlu0 %v1000
  %v1002 = vpop.xlane.xlu0 %1001
  %v1003 = vsel %vm584, %v971, 0.0
  %1004 = vadd.xlane.f32.xlu0 %v1003
  %v1005 = vpop.xlane.xlu0 %1004
  %v1006 = vsel %vm584, %v972, 0.0
  %1007 = vadd.xlane.f32.xlu0 %v1006
  %v1008 = vpop.xlane.xlu0 %1007
  %v1009 = vsel %vm584, %v973, 0.0
  %1010 = vadd.xlane.f32.xlu0 %v1009
  %v1011 = vpop.xlane.xlu0 %1010
  %v1012 = vsel %vm584, %v974, 0.0
  %1013 = vadd.xlane.f32.xlu0 %v1012
  %v1014 = vpop.xlane.xlu0 %1013
  %v1015 = vsel %vm584, %v975, 0.0
  %1016 = vadd.xlane.f32.xlu0 %v1015
  %v1017 = vpop.xlane.xlu0 %1016
  %v1018 = vsel %vm584, %v976, 0.0
  %1019 = vadd.xlane.f32.xlu0 %v1018
  %v1020 = vpop.xlane.xlu0 %1019
  %v1021 = vsel %vm584, %v977, 0.0
  %1022 = vadd.xlane.f32.xlu0 %v1021
  %v1023 = vpop.xlane.xlu0 %1022
  %v1024 = vsel %vm584, %v978, 0.0
  %1025 = vadd.xlane.f32.xlu0 %v1024
  %v1026 = vpop.xlane.xlu0 %1025
  %v1027 = vrcp.pop 32.0
  %v1028 = vmul.f32 %v981, %v1027
  %v1029 = vmul.f32 %v984, %v1027
  %v1030 = vmul.f32 %v987, %v1027
  %v1031 = vmul.f32 %v990, %v1027
  %v1032 = vmul.f32 %v993, %v1027
  %v1033 = vmul.f32 %v996, %v1027
  %v1034 = vmul.f32 %v999, %v1027
  %v1035 = vmul.f32 %v1002, %v1027
  %v1036 = vmul.f32 %v1005, %v1027
  %v1037 = vmul.f32 %v1008, %v1027
  %v1038 = vmul.f32 %v1011, %v1027
  %v1039 = vmul.f32 %v1014, %v1027
  %v1040 = vmul.f32 %v1017, %v1027
  %v1041 = vmul.f32 %v1020, %v1027
  %v1042 = vmul.f32 %v1023, %v1027
  %v1043 = vmul.f32 %v1026, %v1027
  %v1044 = vsub.f32 %v963, %v1028
  %v1045 = vsub.f32 %v964, %v1029
  %v1046 = vsub.f32 %v965, %v1030
  %v1047 = vsub.f32 %v966, %v1031
  %v1048 = vsub.f32 %v967, %v1032
  %v1049 = vsub.f32 %v968, %v1033
  %v1050 = vsub.f32 %v969, %v1034
  %v1051 = vsub.f32 %v970, %v1035
  %v1052 = vsub.f32 %v971, %v1036
  %v1053 = vsub.f32 %v972, %v1037
  %v1054 = vsub.f32 %v973, %v1038
  %v1055 = vsub.f32 %v974, %v1039
  %v1056 = vsub.f32 %v975, %v1040
  %v1057 = vsub.f32 %v976, %v1041
  %v1058 = vsub.f32 %v977, %v1042
  %v1059 = vsub.f32 %v978, %v1043
  %v1060 = vmul.f32 %v1044, %v1044
  %v1061 = vmul.f32 %v1045, %v1045
  %v1062 = vmul.f32 %v1046, %v1046
  %v1063 = vmul.f32 %v1047, %v1047
  %v1064 = vmul.f32 %v1048, %v1048
  %v1065 = vmul.f32 %v1049, %v1049
  %v1066 = vmul.f32 %v1050, %v1050
  %v1067 = vmul.f32 %v1051, %v1051
  %v1068 = vmul.f32 %v1052, %v1052
  %v1069 = vmul.f32 %v1053, %v1053
  %v1070 = vmul.f32 %v1054, %v1054
  %v1071 = vmul.f32 %v1055, %v1055
  %v1072 = vmul.f32 %v1056, %v1056
  %v1073 = vmul.f32 %v1057, %v1057
  %v1074 = vmul.f32 %v1058, %v1058
  %v1075 = vmul.f32 %v1059, %v1059
  %v1076 = vsel %vm584, %v1060, 0.0
  %1077 = vadd.xlane.f32.xlu0 %v1076
  %v1078 = vpop.xlane.xlu0 %1077
  %v1079 = vsel %vm584, %v1061, 0.0
  %1080 = vadd.xlane.f32.xlu0 %v1079
  %v1081 = vpop.xlane.xlu0 %1080
  %v1082 = vsel %vm584, %v1062, 0.0
  %1083 = vadd.xlane.f32.xlu0 %v1082
  %v1084 = vpop.xlane.xlu0 %1083
  %v1085 = vsel %vm584, %v1063, 0.0
  %1086 = vadd.xlane.f32.xlu0 %v1085
  %v1087 = vpop.xlane.xlu0 %1086
  %v1088 = vsel %vm584, %v1064, 0.0
  %1089 = vadd.xlane.f32.xlu0 %v1088
  %v1090 = vpop.xlane.xlu0 %1089
  %v1091 = vsel %vm584, %v1065, 0.0
  %1092 = vadd.xlane.f32.xlu0 %v1091
  %v1093 = vpop.xlane.xlu0 %1092
  %v1094 = vsel %vm584, %v1066, 0.0
  %1095 = vadd.xlane.f32.xlu0 %v1094
  %v1096 = vpop.xlane.xlu0 %1095
  %v1097 = vsel %vm584, %v1067, 0.0
  %1098 = vadd.xlane.f32.xlu0 %v1097
  %v1099 = vpop.xlane.xlu0 %1098
  %v1100 = vsel %vm584, %v1068, 0.0
  %1101 = vadd.xlane.f32.xlu0 %v1100
  %v1102 = vpop.xlane.xlu0 %1101
  %v1103 = vsel %vm584, %v1069, 0.0
  %1104 = vadd.xlane.f32.xlu0 %v1103
  %v1105 = vpop.xlane.xlu0 %1104
  %v1106 = vsel %vm584, %v1070, 0.0
  %1107 = vadd.xlane.f32.xlu0 %v1106
  %v1108 = vpop.xlane.xlu0 %1107
  %v1109 = vsel %vm584, %v1071, 0.0
  %1110 = vadd.xlane.f32.xlu0 %v1109
  %v1111 = vpop.xlane.xlu0 %1110
  %v1112 = vsel %vm584, %v1072, 0.0
  %1113 = vadd.xlane.f32.xlu0 %v1112
  %v1114 = vpop.xlane.xlu0 %1113
  %v1115 = vsel %vm584, %v1073, 0.0
  %1116 = vadd.xlane.f32.xlu0 %v1115
  %v1117 = vpop.xlane.xlu0 %1116
  %v1118 = vsel %vm584, %v1074, 0.0
  %1119 = vadd.xlane.f32.xlu0 %v1118
  %v1120 = vpop.xlane.xlu0 %1119
  %v1121 = vsel %vm584, %v1075, 0.0
  %1122 = vadd.xlane.f32.xlu0 %v1121
  %v1123 = vpop.xlane.xlu0 %1122
  %v1124 = vmul.f32 %v1078, %v1027
  %v1125 = vmul.f32 %v1081, %v1027
  %v1126 = vmul.f32 %v1084, %v1027
  %v1127 = vmul.f32 %v1087, %v1027
  %v1128 = vmul.f32 %v1090, %v1027
  %v1129 = vmul.f32 %v1093, %v1027
  %v1130 = vmul.f32 %v1096, %v1027
  %v1131 = vmul.f32 %v1099, %v1027
  %v1132 = vmul.f32 %v1102, %v1027
  %v1133 = vmul.f32 %v1105, %v1027
  %v1134 = vmul.f32 %v1108, %v1027
  %v1135 = vmul.f32 %v1111, %v1027
  %v1136 = vmul.f32 %v1114, %v1027
  %v1137 = vmul.f32 %v1117, %v1027
  %v1138 = vmul.f32 %v1120, %v1027
  %v1139 = vmul.f32 %v1123, %v1027
  %v1140 = vadd.f32 %v1124, 1e-05
  %v1141 = vadd.f32 %v1125, 1e-05
  %v1142 = vadd.f32 %v1126, 1e-05
  %v1143 = vadd.f32 %v1127, 1e-05
  %v1144 = vadd.f32 %v1128, 1e-05
  %v1145 = vadd.f32 %v1129, 1e-05
  %v1146 = vadd.f32 %v1130, 1e-05
  %v1147 = vadd.f32 %v1131, 1e-05
  %v1148 = vadd.f32 %v1132, 1e-05
  %v1149 = vadd.f32 %v1133, 1e-05
  %v1150 = vadd.f32 %v1134, 1e-05
  %v1151 = vadd.f32 %v1135, 1e-05
  %v1152 = vadd.f32 %v1136, 1e-05
  %v1153 = vadd.f32 %v1137, 1e-05
  %v1154 = vadd.f32 %v1138, 1e-05
  %v1155 = vadd.f32 %v1139, 1e-05
  %v1156 = vrsqrt.pop %v1140
  %v1157 = vrsqrt.pop %v1141
  %v1158 = vrsqrt.pop %v1142
  %v1159 = vrsqrt.pop %v1143
  %v1160 = vrsqrt.pop %v1144
  %v1161 = vrsqrt.pop %v1145
  %v1162 = vrsqrt.pop %v1146
  %v1163 = vrsqrt.pop %v1147
  %v1164 = vrsqrt.pop %v1148
  %v1165 = vrsqrt.pop %v1149
  %v1166 = vrsqrt.pop %v1150
  %v1167 = vrsqrt.pop %v1151
  %v1168 = vrsqrt.pop %v1152
  %v1169 = vrsqrt.pop %v1153
  %v1170 = vrsqrt.pop %v1154
  %v1171 = vrsqrt.pop %v1155
  %v1172 = vmul.f32 %v1044, %v1156
  %v1173 = vmul.f32 %v1045, %v1157
  %v1174 = vmul.f32 %v1046, %v1158
  %v1175 = vmul.f32 %v1047, %v1159
  %v1176 = vmul.f32 %v1048, %v1160
  %v1177 = vmul.f32 %v1049, %v1161
  %v1178 = vmul.f32 %v1050, %v1162
  %v1179 = vmul.f32 %v1051, %v1163
  %v1180 = vmul.f32 %v1052, %v1164
  %v1181 = vmul.f32 %v1053, %v1165
  %v1182 = vmul.f32 %v1054, %v1166
  %v1183 = vmul.f32 %v1055, %v1167
  %v1184 = vmul.f32 %v1056, %v1168
  %v1185 = vmul.f32 %v1057, %v1169
  %v1186 = vmul.f32 %v1058, %v1170
  %v1187 = vmul.f32 %v1059, %v1171
  %v1188 = vld [vmem:[%s3] sm:$0x1]
  %v1190 = vlaneseq
  %v1191 = vshrl.u32 %v1190, 7
  %v1192 = vsub.s32 0, %v1191
  %v1193 = vrot.slane %v1188, %v1192
  %v1195 = vmul.f32 %v1172, %v1193
  %v1196 = vmul.f32 %v1173, %v1193
  %v1197 = vmul.f32 %v1174, %v1193
  %v1198 = vmul.f32 %v1175, %v1193
  %v1199 = vmul.f32 %v1176, %v1193
  %v1200 = vmul.f32 %v1177, %v1193
  %v1201 = vmul.f32 %v1178, %v1193
  %v1202 = vmul.f32 %v1179, %v1193
  %v1203 = vmul.f32 %v1180, %v1193
  %v1204 = vmul.f32 %v1181, %v1193
  %v1205 = vmul.f32 %v1182, %v1193
  %v1206 = vmul.f32 %v1183, %v1193
  %v1207 = vmul.f32 %v1184, %v1193
  %v1208 = vmul.f32 %v1185, %v1193
  %v1209 = vmul.f32 %v1186, %v1193
  %v1210 = vmul.f32 %v1187, %v1193
  %v1211 = vld [vmem:[%s4] sm:$0x1]
  %v1213 = vlaneseq
  %v1214 = vshrl.u32 %v1213, 7
  %v1215 = vsub.s32 0, %v1214
  %v1216 = vrot.slane %v1211, %v1215
  %v1218 = vadd.f32 %v1195, %v1216
  %v1219 = vadd.f32 %v1196, %v1216
  %v1220 = vadd.f32 %v1197, %v1216
  %v1221 = vadd.f32 %v1198, %v1216
  %v1222 = vadd.f32 %v1199, %v1216
  %v1223 = vadd.f32 %v1200, %v1216
  %v1224 = vadd.f32 %v1201, %v1216
  %v1225 = vadd.f32 %v1202, %v1216
  %v1226 = vadd.f32 %v1203, %v1216
  %v1227 = vadd.f32 %v1204, %v1216
  %v1228 = vadd.f32 %v1205, %v1216
  %v1229 = vadd.f32 %v1206, %v1216
  %v1230 = vadd.f32 %v1207, %v1216
  %v1231 = vadd.f32 %v1208, %v1216
  %v1232 = vadd.f32 %v1209, %v1216
  %v1233 = vadd.f32 %v1210, %v1216
  %v1234 = vsel %vm584, %v1218, 0.0
  %v1235 = vsel %vm584, %v1219, 0.0
  %v1236 = vsel %vm584, %v1220, 0.0
  %v1237 = vsel %vm584, %v1221, 0.0
  %v1238 = vsel %vm584, %v1222, 0.0
  %v1239 = vsel %vm584, %v1223, 0.0
  %v1240 = vsel %vm584, %v1224, 0.0
  %v1241 = vsel %vm584, %v1225, 0.0
  %v1242 = vsel %vm584, %v1226, 0.0
  %v1243 = vsel %vm584, %v1227, 0.0
  %v1244 = vsel %vm584, %v1228, 0.0
  %v1245 = vsel %vm584, %v1229, 0.0
  %v1246 = vsel %vm584, %v1230, 0.0
  %v1247 = vsel %vm584, %v1231, 0.0
  %v1248 = vsel %vm584, %v1232, 0.0
  %v1249 = vsel %vm584, %v1233, 0.0
  %1250 = vst [vmem:[%s5] sm:$0xff] %v1234
  %1251 = vst [vmem:[%s5 + $0x8] sm:$0xff] %v1235
  %1252 = vst [vmem:[%s5 + $0x10] sm:$0xff] %v1236
  %1253 = vst [vmem:[%s5 + $0x18] sm:$0xff] %v1237
  %1254 = vst [vmem:[%s5 + $0x20] sm:$0xff] %v1238
  %1255 = vst [vmem:[%s5 + $0x28] sm:$0xff] %v1239
  %1256 = vst [vmem:[%s5 + $0x30] sm:$0xff] %v1240
  %1257 = vst [vmem:[%s5 + $0x38] sm:$0xff] %v1241
  %1258 = vst [vmem:[%s5 + $0x40] sm:$0xff] %v1242
  %1259 = vst [vmem:[%s5 + $0x48] sm:$0xff] %v1243
  %1260 = vst [vmem:[%s5 + $0x50] sm:$0xff] %v1244
  %1261 = vst [vmem:[%s5 + $0x58] sm:$0xff] %v1245
  %1262 = vst [vmem:[%s5 + $0x60] sm:$0xff] %v1246
  %1263 = vst [vmem:[%s5 + $0x68] sm:$0xff] %v1247
  %1264 = vst [vmem:[%s5 + $0x70] sm:$0xff] %v1248
  %1265 = vst [vmem:[%s5 + $0x78] sm:$0xff] %v1249
  // Predicated region
  $region22: #{st_conv_block.5} parent=0 // pred_check
    _
  $region23: #{st_conv_block.5} parent=0 // pred_check_branch
    %1267 = sbr.rel (0) target = $region25
  $region24: #{st_conv_block.5} parent=0 // pred_region
    _
  $region25: #{st_conv_block.5} parent=0 // pred_fallthru
    _
  // Predicated region
  $region26: #{st_conv_block.5} parent=0 // pred_check
    _
  $region27: #{st_conv_block.5} parent=0 // pred_check_branch
    %1269 = sbr.rel (0) target = $region29
  $region28: #{st_conv_block.5} parent=0 // pred_region
    _
  $region29: #{st_conv_block.5} parent=0 // pred_fallthru
    _

</llo_original>
